<compile_context>
chip_gen: v6e
topology: v6e:2x2x1
jax: 0.10.0
libtpu: 0.0.40
codegen_flags: <defaults>
</compile_context>

<pallas_src>
from functools import partial

import numpy as np
import jax
import jax.numpy as jnp
from jax.experimental import pallas as pl
from jax.experimental.pallas import tpu as pltpu


# ----------------------------------------------------------------------------
# small helpers
# ----------------------------------------------------------------------------
def _round_up(x, m):
    return (x + m - 1) // m * m


def _pick_row_tile(m, lane_cols, max_bytes):
    """Largest row tile that divides m, is a multiple of 8 and fits the byte budget."""
    if m * lane_cols * 4 <= max_bytes:
        return m
    best = None
    for d in range(8, m + 1, 8):
        if m % d == 0 and d * lane_cols * 4 <= max_bytes:
            best = d
    return best if best is not None else m


def _mxu_dot(a, b):
    return jnp.dot(a, b, preferred_element_type=jnp.float32,
                   precision=jax.lax.Precision.HIGHEST)


def _grouped_conv_dense(w, groups):
    """PyTorch grouped conv weight (Cout, Cin_g, kh, kw) -> dense (kh, kw, Cin, Cout)."""
    w = np.asarray(w, np.float32)
    cout, cin_g, kh, kw = w.shape
    cin, cout_g = cin_g * groups, cout // groups
    dense = np.zeros((kh, kw, cin, cout), np.float32)
    for g in range(groups):
        dense[:, :, g * cin_g:(g + 1) * cin_g, g * cout_g:(g + 1) * cout_g] = \
            np.transpose(w[g * cout_g:(g + 1) * cout_g], (2, 3, 1, 0))
    return dense


def _bn_fold(gamma, beta, mean, var, eps=1e-5):
    g = np.asarray(gamma, np.float32)
    b = np.asarray(beta, np.float32)
    m = np.asarray(mean, np.float32)
    v = np.asarray(var, np.float32)
    s = g / np.sqrt(v + eps)
    return s, b - m * s


# ----------------------------------------------------------------------------
# Kernel 1: 1x1 conv (+ folded BN) + bias + [residual] + ReLU, row-tiled matmul.
# ----------------------------------------------------------------------------
def pw_kernel(x_ref, w_ref, b_ref, o_ref):
    acc = _mxu_dot(x_ref[...], w_ref[...])
    o_ref[...] = jnp.maximum(acc + b_ref[...], 0.0)


def pw_res_kernel(x_ref, w_ref, b_ref, r_ref, o_ref):
    acc = _mxu_dot(x_ref[...], w_ref[...])
    o_ref[...] = jnp.maximum(acc + b_ref[...] + r_ref[...], 0.0)


def pointwise_matmul(x2d, w, b, *, tm=512, residual=None):
    m, k = x2d.shape
    n = w.shape[1]
    tm = int(_round_up(max(8, min(tm, m)), 8))
    mp = _round_up(m, tm)
    if mp != m:
        x2d = jnp.pad(x2d, ((0, mp - m), (0, 0)))
        if residual is not None:
            residual = jnp.pad(residual, ((0, mp - m), (0, 0)))
    in_specs = [pl.BlockSpec((tm, k), lambda i: (i, 0)),
                pl.BlockSpec((k, n), lambda i: (0, 0)),
                pl.BlockSpec((1, n), lambda i: (0, 0))]
    args = [x2d, w, b]
    kern = pw_kernel
    if residual is not None:
        in_specs.append(pl.BlockSpec((tm, n), lambda i: (i, 0)))
        args.append(residual)
        kern = pw_res_kernel
    out = pl.pallas_call(
        kern,
        out_shape=jax.ShapeDtypeStruct((mp, n), jnp.float32),
        grid=(mp // tm,),
        in_specs=in_specs,
        out_specs=pl.BlockSpec((tm, n), lambda i: (i, 0)),
        compiler_params=pltpu.CompilerParams(dimension_semantics=("parallel",)),
    )(*args)
    return out[:m]


# ----------------------------------------------------------------------------
# Kernel 2: SplAt 3x3 grouped conv (+BN) + ReLU with fused GAP column-sums.
#   Grid = (B,); each step keeps the whole padded image in VMEM and accumulates the
#   kh*kw taps as shifted slices of the flattened image (no im2col in HBM).
# ----------------------------------------------------------------------------
def splat_conv_kernel(x_ref, w_ref, b_ref, mask_ref, y_ref, gsum_ref, *,
                      shifts, m_img, rcpad):
    acc = jnp.zeros((m_img, rcpad), jnp.float32)
    for k, s in enumerate(shifts):                       # static tap offsets
        patch = x_ref[0, pl.ds(s, m_img), :]             # (m_img, Cin)
        acc = acc + _mxu_dot(patch, w_ref[k])
    y = jnp.maximum(acc + b_ref[...], 0.0) * mask_ref[0]  # zero wrap-around columns
    y_ref[0] = y
    gsum_ref[...] = jnp.sum(y, axis=0, keepdims=True)[None]   # fused GAP column sums


# ----------------------------------------------------------------------------
# Kernel 3: attention coefficients (GAP -> fc1+ReLU -> fc2 -> rSoftMax), tiny.
# ----------------------------------------------------------------------------
def splat_att_kernel(gsum_ref, w1_ref, b1_ref, w2_ref, b2_ref, att_ref, *,
                     radix, cpad, inv_hw):
    s = gsum_ref[...][:, 0, :]                           # (B, radix*cpad)
    gap = s[:, 0:cpad]
    for r in range(1, radix):
        gap = gap + s[:, r * cpad:(r + 1) * cpad]
    gap = gap * inv_hw                                   # adaptive_avg_pool2d
    h = jnp.maximum(_mxu_dot(gap, w1_ref[...]) + b1_ref[...], 0.0)
    logits = _mxu_dot(h, w2_ref[...]) + b2_ref[...]
    if radix > 1:                                        # softmax over the radix axis
        parts = [logits[:, r * cpad:(r + 1) * cpad] for r in range(radix)]
        m = parts[0]
        for p in parts[1:]:
            m = jnp.maximum(m, p)
        es = [jnp.exp(p - m) for p in parts]
        den = es[0]
        for e in es[1:]:
            den = den + e
        inv = pl.reciprocal(den, approx=True)            # EUP slot, ~free
        for r in range(radix):
            att_ref[:, :, r * cpad:(r + 1) * cpad] = (es[r] * inv)[:, None, :]
    else:
        att_ref[...] = (1.0 / (1.0 + jnp.exp(-logits)))[:, None, :]


# ----------------------------------------------------------------------------
# Kernel 4: attention apply, elementwise, tiled over (batch, spatial row blocks).
# ----------------------------------------------------------------------------
def splat_apply_kernel(y_ref, att_ref, o_ref, *, radix, cpad):
    y = y_ref[0]                                         # (tile, radix*cpad)
    a = att_ref[0]                                       # (1, radix*cpad)
    out = y[:, 0:cpad] * a[:, 0:cpad]
    for r in range(1, radix):
        out = out + y[:, r * cpad:(r + 1) * cpad] * a[:, r * cpad:(r + 1) * cpad]
    o_ref[0] = out


# ----------------------------------------------------------------------------
# SplAtConv2d wrapper (NHWC in / NHWC out with lane-padded channels).
# ----------------------------------------------------------------------------
def splat_conv2d_nhwc(a, w, *, radix, dilation, padding, apply_tile_bytes):
    b_, h, w_, cinp = a.shape
    kh, kw = w['kh'], w['kw']
    dh, dw = dilation
    ph, pw_ = padding
    cpad, rcpad = w['cpad'], w['rcpad']
    hp, wp = h + 2 * ph, w_ + 2 * pw_
    ho, wo = hp - dh * (kh - 1), wp - dw * (kw - 1)      # stride == 1 only
    m_img = ho * wp
    extra = (kw - 1) * dw                                # keep every tap slice in bounds

    xf = jnp.pad(a, ((0, 0), (ph, ph), (pw_, pw_), (0, 0))).reshape(b_, hp * wp, cinp)
    if extra:
        xf = jnp.pad(xf, ((0, 0), (0, extra), (0, 0)))
    xlen = hp * wp + extra
    colmask = jnp.asarray(
        (np.arange(m_img) % wp < wo).astype(np.float32).reshape(1, m_img, 1))
    shifts = tuple(i * dh * wp + j * dw for i in range(kh) for j in range(kw))

    # 3x3 grouped conv + (folded BN) + ReLU with fused GAP reduction
    y, gsum = pl.pallas_call(
        partial(splat_conv_kernel, shifts=shifts, m_img=m_img, rcpad=rcpad),
        out_shape=(jax.ShapeDtypeStruct((b_, m_img, rcpad), jnp.float32),
                   jax.ShapeDtypeStruct((b_, 1, rcpad), jnp.float32)),
        grid=(b_,),
        in_specs=[pl.BlockSpec((1, xlen, cinp), lambda b: (b, 0, 0)),
                  pl.BlockSpec((kh * kw, cinp, rcpad), lambda b: (0, 0, 0)),
                  pl.BlockSpec((1, rcpad), lambda b: (0, 0)),
                  pl.BlockSpec((1, m_img, 1), lambda b: (0, 0, 0))],
        out_specs=(pl.BlockSpec((1, m_img, rcpad), lambda b: (b, 0, 0)),
                   pl.BlockSpec((1, 1, rcpad), lambda b: (b, 0, 0))),
        compiler_params=pltpu.CompilerParams(
            dimension_semantics=("parallel",),
            vmem_limit_bytes=48 * 1024 * 1024),
    )(xf, w['wc'], w['bc'], colmask)

    # attention coefficients from the (B, radix*Cpad) fused reduction
    att = pl.pallas_call(
        partial(splat_att_kernel, radix=radix, cpad=cpad, inv_hw=1.0 / float(ho * wo)),
        out_shape=jax.ShapeDtypeStruct((b_, 1, rcpad), jnp.float32),
        grid=(1,),
        in_specs=[pl.BlockSpec((b_, 1, rcpad), lambda i: (0, 0, 0)),
                  pl.BlockSpec(w['wf1'].shape, lambda i: (0, 0)),
                  pl.BlockSpec(w['bf1'].shape, lambda i: (0, 0)),
                  pl.BlockSpec(w['wf2'].shape, lambda i: (0, 0)),
                  pl.BlockSpec(w['bf2'].shape, lambda i: (0, 0))],
        out_specs=pl.BlockSpec((b_, 1, rcpad), lambda i: (0, 0, 0)),
    )(gsum, w['wf1'], w['bf1'], w['wf2'], w['bf2'])

    # elementwise attention-weighted sum of the radix splits, tiled + fully parallel
    tile = _pick_row_tile(m_img, rcpad, apply_tile_bytes)
    out = pl.pallas_call(
        partial(splat_apply_kernel, radix=radix, cpad=cpad),
        out_shape=jax.ShapeDtypeStruct((b_, m_img, cpad), jnp.float32),
        grid=(b_, m_img // tile),
        in_specs=[pl.BlockSpec((1, tile, rcpad), lambda b, t: (b, t, 0)),
                  pl.BlockSpec((1, 1, rcpad), lambda b, t: (b, 0, 0))],
        out_specs=pl.BlockSpec((1, tile, cpad), lambda b, t: (b, t, 0)),
        compiler_params=pltpu.CompilerParams(
            dimension_semantics=("parallel", "parallel")),
    )(y, att)

    # drop the (kw-1)*dw wrap-around columns; channels stay lane-padded
    return out.reshape(b_, ho, wp, cpad)[:, :, :wo, :]


# ----------------------------------------------------------------------------
# Host-side weight prep: grouped -> dense block-diagonal, BN fold, lane padding,
# rSoftMax column permutation.
# ----------------------------------------------------------------------------
def prepare_bottleneck_weights(params, *, radix, cardinality, channels, planes):
    LANE = 128
    gw = channels                          # SplAtConv2d in_channels == channels
    rc = gw * radix
    cmid = _round_up(gw, LANE)
    cpad = _round_up(gw, LANE)
    rcpad = radix * cpad
    cexp = planes * 4
    coutp = _round_up(cexp, LANE)

    # conv1 (1x1, no bias) folded with bn1
    d1 = _grouped_conv_dense(params['conv1_w'], 1)[0, 0]                 # (inplanes, gw)
    s, sh = _bn_fold(*params['bn1'])
    w1 = np.zeros((d1.shape[0], cmid), np.float32); w1[:, :gw] = d1 * s[None, :]
    b1 = np.zeros((1, cmid), np.float32); b1[0, :gw] = sh

    # SplAt 3x3 grouped conv (groups = card*radix, no bias) folded with bn0
    kh, kw = int(params['c2_conv_w'].shape[2]), int(params['c2_conv_w'].shape[3])
    d2 = _grouped_conv_dense(params['c2_conv_w'], cardinality * radix)   # (kh,kw,gw,rc)
    s0, sh0 = _bn_fold(*params['c2_bn0'])
    d2 = (d2 * s0[None, None, None, :]).reshape(kh * kw, gw, rc)
    wc = np.zeros((kh * kw, cmid, rcpad), np.float32)
    bc = np.zeros((1, rcpad), np.float32)
    for r in range(radix):
        wc[:, :gw, r * cpad:r * cpad + gw] = d2[:, :, r * gw:(r + 1) * gw]
        bc[0, r * cpad:r * cpad + gw] = sh0[r * gw:(r + 1) * gw]

    # fc1 (1x1 grouped, bias) folded with the SplAt bn1
    ic = int(params['c2_fc1_w'].shape[0])
    df1 = _grouped_conv_dense(params['c2_fc1_w'], cardinality)[0, 0]     # (gw, ic)
    s1, sh1 = _bn_fold(*params['c2_bn1'])
    wf1 = np.zeros((cpad, ic), np.float32); wf1[:gw] = df1 * s1[None, :]
    bf1 = (np.asarray(params['c2_fc1_b'], np.float32) * s1 + sh1).reshape(1, ic)

    # fc2 (1x1 grouped, bias); permute columns into rSoftMax (radix, card, c) order + pad
    df2 = _grouped_conv_dense(params['c2_fc2_w'], cardinality)[0, 0]     # (ic, rc)
    bias2 = np.asarray(params['c2_fc2_b'], np.float32)
    c_per = gw // cardinality
    perm = np.zeros(rc, np.int32)
    for r in range(radix):
        for g in range(cardinality):
            for c in range(c_per):
                perm[r * gw + g * c_per + c] = g * radix * c_per + r * c_per + c
    df2p, bias2p = df2[:, perm], bias2[perm]
    wf2 = np.zeros((ic, rcpad), np.float32)
    bf2 = np.zeros((1, rcpad), np.float32)
    for r in range(radix):
        wf2[:, r * cpad:r * cpad + gw] = df2p[:, r * gw:(r + 1) * gw]
        bf2[0, r * cpad:r * cpad + gw] = bias2p[r * gw:(r + 1) * gw]

    # conv3 (1x1, no bias) folded with bn3
    d3 = _grouped_conv_dense(params['conv3_w'], 1)[0, 0]                 # (gw, cexp)
    s3, sh3 = _bn_fold(*params['bn3'])
    w3 = np.zeros((cpad, coutp), np.float32); w3[:gw, :cexp] = d3 * s3[None, :]
    b3 = np.zeros((1, coutp), np.float32); b3[0, :cexp] = sh3

    j = jnp.asarray
    return dict(w1=j(w1), b1=j(b1), wc=j(wc), bc=j(bc), wf1=j(wf1), bf1=j(bf1),
                wf2=j(wf2), bf2=j(bf2), w3=j(w3), b3=j(b3),
                cmid=cmid, cpad=cpad, rcpad=rcpad, coutp=coutp, cexp=cexp,
                kh=kh, kw=kw)


# ----------------------------------------------------------------------------
# Full Bottleneck forward (NCHW in / NCHW out; NHWC internally).
# ----------------------------------------------------------------------------
def bottleneck_forward(x_nchw, params, *, radix, cardinality, channels, planes, inplanes,
                       dilation=1, pw_tile=512, apply_tile_bytes=2 * 1024 * 1024):
    w = prepare_bottleneck_weights(params, radix=radix, cardinality=cardinality,
                                   channels=channels, planes=planes)
    x = jnp.transpose(x_nchw, (0, 2, 3, 1)).astype(jnp.float32)          # NCHW -> NHWC once
    b_, h, w_, cin = x.shape

    # conv1 (1x1) + BN + ReLU
    h1 = pointwise_matmul(x.reshape(b_ * h * w_, cin), w['w1'], w['b1'], tm=pw_tile)
    h1 = h1.reshape(b_, h, w_, w['cmid'])

    # conv2 = SplAtConv2d (3x3 grouped conv + radix-split attention)
    h2 = splat_conv2d_nhwc(h1, w, radix=radix, dilation=(dilation, dilation),
                           padding=(dilation, dilation), apply_tile_bytes=apply_tile_bytes)
    _, ho, wo, _ = h2.shape
    assert (ho, wo) == (h, w_)          # stride == 1, padding == dilation
    assert inplanes == planes * 4       # downsample is None in this configuration

    # conv3 (1x1) + BN + residual + ReLU
    resid = jnp.pad(x.reshape(b_ * h * w_, cin), ((0, 0), (0, w['coutp'] - cin)))
    out = pointwise_matmul(h2.reshape(b_ * ho * wo, w['cpad']), w['w3'], w['b3'],
                           tm=pw_tile, residual=resid)
    out = out[:, :w['cexp']].reshape(b_, ho, wo, w['cexp'])
    return jnp.transpose(out, (0, 3, 1, 2))                              # NHWC -> NCHW once


# ----------------------------------------------------------------------------
# Pure-JAX reference (mirrors the PyTorch forward; BN in eval mode).
# ----------------------------------------------------------------------------
def _bn_ref(x, p, eps=1e-5):
    g, b, m, v = p
    s = g / jnp.sqrt(v + eps)
    return x * s[None, :, None, None] + (b - m * s)[None, :, None, None]


def bottleneck_reference(x, params, *, radix, cardinality, channels, dilation):
    dn = ('NCHW', 'OIHW', 'NCHW')
    prec = jax.lax.Precision.HIGHEST
    relu = lambda t: jnp.maximum(t, 0.0)
    d = dilation

    out = jax.lax.conv_general_dilated(x, params['conv1_w'], (1, 1), 'VALID',
                                       dimension_numbers=dn, precision=prec)
    out = relu(_bn_ref(out, params['bn1']))

    y = jax.lax.conv_general_dilated(out, params['c2_conv_w'], (1, 1),
                                     [(d, d), (d, d)], rhs_dilation=(d, d),
                                     feature_group_count=cardinality * radix,
                                     dimension_numbers=dn, precision=prec)
    y = relu(_bn_ref(y, params['c2_bn0']))
    b_ = y.shape[0]
    if radix > 1:
        splits = [y[:, r * channels:(r + 1) * channels] for r in range(radix)]
        gap = sum(splits)
    else:
        splits = [y]
        gap = y
    gap = jnp.mean(gap, axis=(2, 3), keepdims=True)
    gap = jax.lax.conv_general_dilated(gap, params['c2_fc1_w'], (1, 1), 'VALID',
                                       feature_group_count=cardinality,
                                       dimension_numbers=dn, precision=prec)
    gap = relu(_bn_ref(gap + params['c2_fc1_b'][None, :, None, None], params['c2_bn1']))
    att = jax.lax.conv_general_dilated(gap, params['c2_fc2_w'], (1, 1), 'VALID',
                                       feature_group_count=cardinality,
                                       dimension_numbers=dn, precision=prec)
    att = (att + params['c2_fc2_b'][None, :, None, None])[:, :, 0, 0]
    if radix > 1:
        a = att.reshape(b_, cardinality, radix, -1).transpose(0, 2, 1, 3)
        a = jax.nn.softmax(a, axis=1).reshape(b_, -1)
    else:
        a = jax.nn.sigmoid(att)
    a = a[:, :, None, None]
    if radix > 1:
        sp = sum(a[:, r * channels:(r + 1) * channels] * splits[r] for r in range(radix))
    else:
        sp = a * y

    o = jax.lax.conv_general_dilated(sp, params['conv3_w'], (1, 1), 'VALID',
                                     dimension_numbers=dn, precision=prec)
    o = _bn_ref(o, params['bn3'])
    return relu(o + x)


# ----------------------------------------------------------------------------
if __name__ == "__main__":
    # Small Bottleneck: inplanes=16, planes=4 -> group_width=4, radix=2, 16x16 spatial.
    B, inplanes, H, W = 2, 16, 16, 16
    planes, radix, cardinality, dilation = 4, 2, 1, 1
    group_width = int(planes * (64 / 64.0)) * cardinality          # 4
    inter_channels = max(group_width * radix // 4, 32)             # 32
    rc = group_width * radix                                       # 8
    expanded = planes * 4                                          # 16 (== inplanes)

    key = jax.random.PRNGKey(0)
    ks = jax.random.split(key, 12)

    def _bnp(k, n):
        k1, k2, k3, k4 = jax.random.split(k, 4)
        return (1.0 + 0.1 * jax.random.normal(k1, (n,), jnp.float32),
                0.1 * jax.random.normal(k2, (n,), jnp.float32),
                0.1 * jax.random.normal(k3, (n,), jnp.float32),
                jax.random.uniform(k4, (n,), jnp.float32, 0.5, 1.5))

    x = jax.random.normal(ks[0], (B, inplanes, H, W), jnp.float32)
    params = dict(
        conv1_w=0.2 * jax.random.normal(ks[1], (group_width, inplanes, 1, 1), jnp.float32),
        bn1=_bnp(ks[2], group_width),
        c2_conv_w=0.3 * jax.random.normal(
            ks[3], (rc, group_width // (cardinality * radix), 3, 3), jnp.float32),
        c2_bn0=_bnp(ks[4], rc),
        c2_fc1_w=0.3 * jax.random.normal(
            ks[5], (inter_channels, group_width // cardinality, 1, 1), jnp.float32),
        c2_fc1_b=0.1 * jax.random.normal(ks[6], (inter_channels,), jnp.float32),
        c2_bn1=_bnp(ks[7], inter_channels),
        c2_fc2_w=0.3 * jax.random.normal(
            ks[8], (rc, inter_channels // cardinality, 1, 1), jnp.float32),
        c2_fc2_b=0.1 * jax.random.normal(ks[9], (rc,), jnp.float32),
        conv3_w=0.2 * jax.random.normal(ks[10], (expanded, group_width, 1, 1), jnp.float32),
        bn3=_bnp(ks[11], expanded),
    )

    out = bottleneck_forward(
        x, params, radix=radix, cardinality=cardinality, channels=group_width,
        planes=planes, inplanes=inplanes, dilation=dilation,
        pw_tile=128,                    # 1x1-conv row tile (use 512-1024 at real sizes)
        apply_tile_bytes=128 * 1024)    # small budget so the demo exercises multi-tile apply
    out = jax.block_until_ready(out)

    ref = bottleneck_reference(x, params, radix=radix, cardinality=cardinality,
                               channels=group_width, dilation=dilation)
    assert out.shape == (B, expanded, H, W)
    # tolerance covers MXU pass differences + approx-reciprocal in the rSoftMax
    np.testing.assert_allclose(np.asarray(out), np.asarray(ref), rtol=1e-2, atol=1e-2)
    print("KERNEL_OK")
</pallas_src>

<mosaic_0001>
module attributes {stable_mosaic.version = 11 : i64} {
  func.func @pw_kernel(%arg0: i32, %arg1: memref<128x16xf32, #tpu.memory_space<vmem>>, %arg2: memref<16x128xf32, #tpu.memory_space<vmem>>, %arg3: memref<1x128xf32, #tpu.memory_space<vmem>>, %arg4: memref<128x128xf32, #tpu.memory_space<vmem>>) attributes {dimension_semantics = [#tpu.dimension_semantics<parallel>], iteration_bounds = array<i64: 4>, scalar_prefetch = 0 : i64, scratch_operands = 0 : i64, tpu.core_type = #tpu.core_type<tc>, window_params = [{transform_indices = @transform_0, window_bounds = array<i64: 128, 16>}, {pipeline_mode = #tpu.pipeline_mode<synchronous>, transform_indices = @transform_1, window_bounds = array<i64: 16, 128>}, {pipeline_mode = #tpu.pipeline_mode<synchronous>, transform_indices = @transform_2, window_bounds = array<i64: 1, 128>}, {transform_indices = @transform_3, window_bounds = array<i64: 128, 128>}]} {
    %c0 = arith.constant 0 : index
    %c0_0 = arith.constant 0 : index
    %0 = vector.load %arg1[%c0, %c0_0] : memref<128x16xf32, #tpu.memory_space<vmem>>, vector<128x16xf32>
    %c0_1 = arith.constant 0 : index
    %c0_2 = arith.constant 0 : index
    %1 = vector.load %arg2[%c0_1, %c0_2] : memref<16x128xf32, #tpu.memory_space<vmem>>, vector<16x128xf32>
    %cst = arith.constant dense<0.000000e+00> : vector<128x128xf32>
    %2 = tpu.matmul %0, %1, %cst {dimension_numbers = #tpu.dot_dimension_numbers<[1], [0], [0], [1], [0, 0, 1, 1], [], []>, precision = #tpu.contract_precision<fp32>} : vector<128x16xf32>, vector<16x128xf32>, vector<128x128xf32> -> vector<128x128xf32>
    %c0_3 = arith.constant 0 : index
    %c0_4 = arith.constant 0 : index
    %3 = vector.load %arg3[%c0_3, %c0_4] : memref<1x128xf32, #tpu.memory_space<vmem>>, vector<1x128xf32>
    %4 = vector.broadcast %3 : vector<1x128xf32> to vector<128x128xf32>
    %5 = arith.addf %2, %4 : vector<128x128xf32>
    %cst_5 = arith.constant 0.000000e+00 : f32
    %6 = vector.broadcast %cst_5 : f32 to vector<128x128xf32>
    %7 = arith.maximumf %5, %6 : vector<128x128xf32>
    %c0_6 = arith.constant 0 : index
    %c0_7 = arith.constant 0 : index
    %8 = vector.load %arg4[%c0_6, %c0_7] : memref<128x128xf32, #tpu.memory_space<vmem>>, vector<128x128xf32>
    tpu.vector_store %arg4[%c0_6, %c0_7], %7 {strides = array<i32>} : memref<128x128xf32, #tpu.memory_space<vmem>>, vector<128x128xf32>,
    return
  }
  func.func @transform_0(%arg0: i32) -> (i32, i32) {
    %c0_i32 = arith.constant 0 : i32
    %c0_i32_0 = arith.constant 0 : i32
    return %arg0, %c0_i32 : i32, i32
  }
  func.func @transform_1(%arg0: i32) -> (i32, i32) {
    %c0_i32 = arith.constant 0 : i32
    %c0_i32_0 = arith.constant 0 : i32
    %c0_i32_1 = arith.constant 0 : i32
    return %c0_i32, %c0_i32_0 : i32, i32
  }
  func.func @transform_2(%arg0: i32) -> (i32, i32) {
    %c0_i32 = arith.constant 0 : i32
    %c0_i32_0 = arith.constant 0 : i32
    %c0_i32_1 = arith.constant 0 : i32
    return %c0_i32, %c0_i32_0 : i32, i32
  }
  func.func @transform_3(%arg0: i32) -> (i32, i32) {
    %c0_i32 = arith.constant 0 : i32
    %c0_i32_0 = arith.constant 0 : i32
    return %arg0, %c0_i32 : i32, i32
  }
}

</mosaic_0001>

<llo_original>
// kernel: tpu_custom_call.1
$region0: #{tpu_custom_call.1}
  #allocation0 [shape = 'u32[]', space=smem, size = 0x4, offset = 0x4, fixed_abs, tag = 'smem constant byte address 0x4 - core index']
  #allocation1 [shape = 'u32[144,128]{1,0:T(1,128)}', space=vmem, size = 0x12000, scoped, tag = 'internal scratch']
  %s0 = inlined_call_operand.vmem [shape: f32[512,16], index: 0, kind: input, shape index: {}]
  %s1 = inlined_call_operand.vmem [shape: f32[16,128], index: 1, kind: input, shape index: {}]
  %s2 = inlined_call_operand.vmem [shape: f32[1,128], index: 2, kind: input, shape index: {}]
  %s3 = inlined_call_operand.hbm [shape: f32[512,128], index: 3, kind: output, shape index: {}]
  %s4 = sld [smem:[#allocation0]]
  $region45: #{tpu_custom_call.1} parent=0
    _
  %s6 = ssub.s32 1, %s4
  %s7 = scalar_select 0, %s6, %s4
  $region1: #{tpu_custom_call.1} parent=0
    #allocation2 [shape = 'u8[131072]{0}', space=vmem, size = 0x20000, scoped, tag = 'output window, operand 0']
    #allocation3 [shape = 's32[2]{0}', space=sflag, size = 0x8, scoped, tag = 'scoped memory for tpu_custom_call.1']
    %8 = vsyncpa [#allocation3], 0
    %s9 = scalar_lea.sflag [#allocation3], 1
    %10 = vsyncpa %s9, 0
    loop: start=0, step=1, limit=6
    $region2: #{tpu_custom_call.1} parent=1 // loop_pre_header
      _
    $region3: #{tpu_custom_call.1} parent=1 // loop_header
      %s12 = sphi 0, %s16
      %p13 = scmp.ge.s32.totalorder %s12, 6
      %s22 = sphi 0, %s24
      %s25 = sphi 0, %s22
      %s26 = sphi 0, %s25
      %s42 = sphi 0, %s26
      %s46 = sphi 0, %s46
      %s48 = sphi 0, %s46
      %s49 = sphi 0, %s48
      %s63 = sphi 0, %s49
      %s67 = sphi 0, %s67
      %s69 = sphi 0, %s67
      %s70 = sphi 0, %s69
      %s84 = sphi 0, %s70
      %s90 = sphi 0, %s92
      %s93 = sphi 0, %s90
      %s94 = sphi 0, %s93
      %s110 = sphi 0, %s94
    $region4: #{tpu_custom_call.1} parent=1 // loop_header_branch
      %15 = sbr.rel (%p13) target = $region8
    $region5: #{tpu_custom_call.1} parent=1 // loop_body
      %s17 = ssub.s32 %s12, 1
      %s18 = ssub.s32 %s12, 2
      %s19 = sadd.s32 %s12, 1
      %s20 = ssub.s32 %s12, %s19
      %p21 = scmp.eq.s32.totalorder %s20, 0
      %s23 = sadd.s32 %s22, 1
      %s24 = scalar_select %p21, %s22, %s23
      %p27 = pneg %p21
      %p28 = scmp.eq.s32.totalorder %s12, 3
      %p29 = por %p27, %p28
      %p30 = scmp.ne.s32.totalorder %s22, %s25
      %p31 = scmp.eq.s32.totalorder %s12, 0
      %p32 = por %p30, %p31
      %p33 = scmp.ne.s32.totalorder %s22, %s25
      %p34 = scmp.eq.s32.totalorder %s17, 3
      %p35 = por %p33, %p34
      %p36 = scmp.ne.s32.totalorder %s25, %s26
      %p37 = scmp.eq.s32.totalorder %s17, 0
      %p38 = por %p36, %p37
      %p39 = scmp.ne.s32.totalorder %s25, %s26
      %p40 = scmp.eq.s32.totalorder %s18, 3
      %p41 = por %p39, %p40
      %p43 = scmp.ne.s32.totalorder %s26, %s42
      %p44 = scmp.eq.s32.totalorder %s18, 0
      %p45 = por %p43, %p44
      %s47 = sadd.s32 %s46, 1
      %p50 = scmp.eq.s32.totalorder %s12, 3
      %p51 = scmp.ne.s32.totalorder %s46, %s48
      %p52 = scmp.eq.s32.totalorder %s12, 0
      %p53 = por %p51, %p52
      %p54 = scmp.ne.s32.totalorder %s46, %s48
      %p55 = scmp.eq.s32.totalorder %s17, 3
      %p56 = por %p54, %p55
      %p57 = scmp.ne.s32.totalorder %s48, %s49
      %p58 = scmp.eq.s32.totalorder %s17, 0
      %p59 = por %p57, %p58
      %p60 = scmp.ne.s32.totalorder %s48, %s49
      %p61 = scmp.eq.s32.totalorder %s18, 3
      %p62 = por %p60, %p61
      %p64 = scmp.ne.s32.totalorder %s49, %s63
      %p65 = scmp.eq.s32.totalorder %s18, 0
      %p66 = por %p64, %p65
      %s68 = sadd.s32 %s67, 1
      %p71 = scmp.eq.s32.totalorder %s12, 3
      %p72 = scmp.ne.s32.totalorder %s67, %s69
      %p73 = scmp.eq.s32.totalorder %s12, 0
      %p74 = por %p72, %p73
      %p75 = scmp.ne.s32.totalorder %s67, %s69
      %p76 = scmp.eq.s32.totalorder %s17, 3
      %p77 = por %p75, %p76
      %p78 = scmp.ne.s32.totalorder %s69, %s70
      %p79 = scmp.eq.s32.totalorder %s17, 0
      %p80 = por %p78, %p79
      %p81 = scmp.ne.s32.totalorder %s69, %s70
      %p82 = scmp.eq.s32.totalorder %s18, 3
      %p83 = por %p81, %p82
      %p85 = scmp.ne.s32.totalorder %s70, %s84
      %p86 = scmp.eq.s32.totalorder %s18, 0
      %p87 = por %p85, %p86
      %s88 = ssub.s32 %s12, %s19
      %p89 = scmp.eq.s32.totalorder %s88, 0
      %s91 = sadd.s32 %s90, 1
      %s92 = scalar_select %p89, %s90, %s91
      %p95 = pneg %p89
      %p96 = scmp.eq.s32.totalorder %s12, 3
      %p97 = por %p95, %p96
      %p98 = scmp.ne.s32.totalorder %s90, %s93
      %p99 = scmp.eq.s32.totalorder %s12, 0
      %p100 = por %p98, %p99
      %p101 = scmp.ne.s32.totalorder %s90, %s93
      %p102 = scmp.eq.s32.totalorder %s17, 3
      %p103 = por %p101, %p102
      %p104 = scmp.ne.s32.totalorder %s93, %s94
      %p105 = scmp.eq.s32.totalorder %s17, 0
      %p106 = por %p104, %p105
      %p107 = scmp.ne.s32.totalorder %s93, %s94
      %p108 = scmp.eq.s32.totalorder %s18, 3
      %p109 = por %p107, %p108
      %p111 = scmp.ne.s32.totalorder %s94, %s110
      %p112 = scmp.eq.s32.totalorder %s18, 0
      %p113 = por %p111, %p112
      %p114 = scmp.le.s32.totalorder 1, %s12
      %p115 = scmp.lt.s32.totalorder %s12, 5
      %p116 = pnand %p114, %p115
      %p117 = pneg %p116
      // Predicated region
      $region9: #{tpu_custom_call.1} parent=5 // pred_check
        _
      $region10: #{tpu_custom_call.1} parent=5 // pred_check_branch
        %119 = sbr.rel (%p116) target = $region12
      $region11: #{tpu_custom_call.1} parent=5 // pred_region
        %s120 = ssub.s32 %s12, 1
        // Predicated region
        $region13: #{tpu_custom_call.1} parent=11 // pred_check
          %p121 = pneg %p59
        $region14: #{tpu_custom_call.1} parent=11 // pred_check_branch
          %123 = sbr.rel (%p121) target = $region16
        $region15: #{tpu_custom_call.1} parent=11 // pred_region
          _
        $region16: #{tpu_custom_call.1} parent=11 // pred_fallthru
          _
        // Predicated region
        $region17: #{tpu_custom_call.1} parent=11 // pred_check
          %p124 = pneg %p80
        $region18: #{tpu_custom_call.1} parent=11 // pred_check_branch
          %126 = sbr.rel (%p124) target = $region20
        $region19: #{tpu_custom_call.1} parent=11 // pred_region
          _
        $region20: #{tpu_custom_call.1} parent=11 // pred_fallthru
          _
      $region12: #{tpu_custom_call.1} parent=5 // pred_fallthru
        _
      %p127 = scmp.lt.s32.totalorder %s12, 4
      // Predicated region
      $region21: #{tpu_custom_call.1} parent=5 // pred_check
        %p128 = pneg %p127
      $region22: #{tpu_custom_call.1} parent=5 // pred_check_branch
        %130 = sbr.rel (%p128) target = $region24
      $region23: #{tpu_custom_call.1} parent=5 // pred_region
        // Predicated region
        $region25: #{tpu_custom_call.1} parent=23 // pred_check
          %p131 = pneg %p32
        $region26: #{tpu_custom_call.1} parent=23 // pred_check_branch
          %133 = sbr.rel (%p131) target = $region28
        $region27: #{tpu_custom_call.1} parent=23 // pred_region
          %s134 = smul.u32 16, %s12
          %p135 = scmp.lt.s32.totalorder %s134, 63
          %s136 = scalar_select %p135, %s134, 63
          %s137 = smul.addr %s136, 8
          %s138 = scalar_lea.vmem %s0, %s137
          %s139 = smul.u32 16, %s12
        $region28: #{tpu_custom_call.1} parent=23 // pred_fallthru
          _
      $region24: #{tpu_custom_call.1} parent=5 // pred_fallthru
        _
      %p140 = scmp.le.s32.totalorder 1, %s12
      %p141 = scmp.lt.s32.totalorder %s12, 5
      %p142 = pnand %p140, %p141
      %p143 = pneg %p142
      // Predicated region
      $region29: #{tpu_custom_call.1} parent=5 // pred_check
        _
      $region30: #{tpu_custom_call.1} parent=5 // pred_check_branch
        %145 = sbr.rel (%p142) target = $region32
      $region31: #{tpu_custom_call.1} parent=5 // pred_region
        %s146 = ssub.s32 %s12, 1
        %s147 = smul.u32 16, %s17
        %p148 = scmp.lt.s32.totalorder %s147, 63
        %s149 = scalar_select %p148, %s147, 63
        %s150 = smul.addr %s149, 8
        %s151 = scalar_lea.vmem %s0, %s150
        %p152 = pneg %p38
        %p153 = pneg %p35
        %p154 = pneg %p59
        %p155 = pneg %p56
        %p156 = pneg %p80
        %p157 = pneg %p77
        %p158 = pneg %p106
        %p159 = pneg %p103
        %s160 = sand.u32 %s93, 1
        %s161 = scalar_lea.sflag [#allocation3], %s160
        %s162 = sand.u32 %s93, 1
        %s163 = smul.addr %s162, 128
        %s164 = scalar_lea.vmem [#allocation2], %s163
        %s165 = smul.u32 16, %s17
        %p166 = scmp.lt.s32.totalorder %s165, 63
        %s167 = scalar_select %p166, %s165, 63
        %s168 = smul.addr %s167, 8
        %s169 = scalar_lea.vmem %s0, %s168
        %s170 = smul.u32 16, %s17
        %s171 = smul.u32 16, %s17
        %v172 = vld [vmem:[%s169] sm:$0xff]
        %v173 = vld [vmem:[%s169 + $0x8] sm:$0xff]
        %v174 = vld [vmem:[%s169 + $0x10] sm:$0xff]
        %v175 = vld [vmem:[%s169 + $0x18] sm:$0xff]
        %v176 = vld [vmem:[%s169 + $0x20] sm:$0xff]
        %v177 = vld [vmem:[%s169 + $0x28] sm:$0xff]
        %v178 = vld [vmem:[%s169 + $0x30] sm:$0xff]
        %v179 = vld [vmem:[%s169 + $0x38] sm:$0xff]
        %v180 = vld [vmem:[%s169 + $0x40] sm:$0xff]
        %v181 = vld [vmem:[%s169 + $0x48] sm:$0xff]
        %v182 = vld [vmem:[%s169 + $0x50] sm:$0xff]
        %v183 = vld [vmem:[%s169 + $0x58] sm:$0xff]
        %v184 = vld [vmem:[%s169 + $0x60] sm:$0xff]
        %v185 = vld [vmem:[%s169 + $0x68] sm:$0xff]
        %v186 = vld [vmem:[%s169 + $0x70] sm:$0xff]
        %v187 = vld [vmem:[%s169 + $0x78] sm:$0xff]
        %v188 = vld [vmem:[%s1] sm:$0xff]
        %v189 = vld [vmem:[%s1 + $0x8] sm:$0xff]
        %v190 = vld [vmem:[%s2] sm:$0x1]
        %v192 = vlaneseq
        %v193 = vshrl.u32 %v192, 7
        %v194 = vsub.s32 0, %v193
        %v195 = vrot.slane %v190, %v194
        %vm197 = vcmask 130048
        %v199 = vsel %vm197, %v172, 0
        %v202 = vsel %vm197, %v173, 0
        %v205 = vsel %vm197, %v174, 0
        %v208 = vsel %vm197, %v175, 0
        %v211 = vsel %vm197, %v176, 0
        %v214 = vsel %vm197, %v177, 0
        %v217 = vsel %vm197, %v178, 0
        %v220 = vsel %vm197, %v179, 0
        %v223 = vsel %vm197, %v180, 0
        %v226 = vsel %vm197, %v181, 0
        %v229 = vsel %vm197, %v182, 0
        %v232 = vsel %vm197, %v183, 0
        %v235 = vsel %vm197, %v184, 0
        %v238 = vsel %vm197, %v185, 0
        %v241 = vsel %vm197, %v186, 0
        %v244 = vsel %vm197, %v187, 0
        %246 = vmatprep.subr.mxu0 0.0
        %247 = vmatpush1.msra.mxu0 0.0
        %248 = vmatprep.subr.mxu0 0.0
        %249 = vmatpush1.msra.mxu0 0.0
        %250 = vmatprep.subr.mxu0 0.0
        %251 = vmatpush1.msra.mxu0 0.0
        %252 = vmatprep.subr.mxu0 0.0
        %253 = vmatpush1.msra.mxu0 0.0
        %254 = vmatprep.subr.mxu0 0.0
        %255 = vmatpush1.msra.mxu0 0.0
        %256 = vmatprep.subr.mxu0 0.0
        %257 = vmatpush1.msra.mxu0 0.0
        %258 = vmatprep.subr.mxu0 0.0
        %259 = vmatpush1.msra.mxu0 0.0
        %260 = vmatprep.subr.mxu0 0.0
        %261 = vmatpush1.msra.mxu0 0.0
        %262 = vmatprep.subr.mxu0 0.0
        %263 = vmatpush1.msra.mxu0 0.0
        %264 = vmatprep.subr.mxu0 0.0
        %265 = vmatpush1.msra.mxu0 0.0
        %266 = vmatprep.subr.mxu0 0.0
        %267 = vmatpush1.msra.mxu0 0.0
        %268 = vmatprep.subr.mxu0 0.0
        %269 = vmatpush1.msra.mxu0 0.0
        %270 = vmatprep.subr.mxu0 0.0
        %271 = vmatpush1.msra.mxu0 0.0
        %272 = vmatprep.subr.mxu0 0.0
        %273 = vmatpush1.msra.mxu0 0.0
        %274 = vmatprep.subr.mxu0 0.0
        %v275 = vand.u32 %v189, 4294901760
        %276 = vmatpush1.msra.mxu0 %v275
        %277 = vmatprep.subr.mxu0 0.0
        %v278 = vand.u32 %v188, 4294901760
        %279 = vmatpush1.msra.mxu0 %v278
        %280 = vmatprep.subr.mxu0 0.0
        %281 = vmatpush2.msra.mxu0 0.0
        %282 = vmatprep.subr.mxu0 0.0
        %283 = vmatpush2.msra.mxu0 0.0
        %284 = vmatprep.subr.mxu0 0.0
        %285 = vmatpush2.msra.mxu0 0.0
        %286 = vmatprep.subr.mxu0 0.0
        %287 = vmatpush2.msra.mxu0 0.0
        %288 = vmatprep.subr.mxu0 0.0
        %289 = vmatpush2.msra.mxu0 0.0
        %290 = vmatprep.subr.mxu0 0.0
        %291 = vmatpush2.msra.mxu0 0.0
        %292 = vmatprep.subr.mxu0 0.0
        %293 = vmatpush2.msra.mxu0 0.0
        %294 = vmatprep.subr.mxu0 0.0
        %295 = vmatpush2.msra.mxu0 0.0
        %296 = vmatprep.subr.mxu0 0.0
        %297 = vmatpush2.msra.mxu0 0.0
        %298 = vmatprep.subr.mxu0 0.0
        %299 = vmatpush2.msra.mxu0 0.0
        %300 = vmatprep.subr.mxu0 0.0
        %301 = vmatpush2.msra.mxu0 0.0
        %302 = vmatprep.subr.mxu0 0.0
        %303 = vmatpush2.msra.mxu0 0.0
        %304 = vmatprep.subr.mxu0 0.0
        %305 = vmatpush2.msra.mxu0 0.0
        %306 = vmatprep.subr.mxu0 0.0
        %307 = vmatpush2.msra.mxu0 0.0
        %308 = vmatprep.subr.mxu0 0.0
        %309 = vmatpush2.msra.mxu0 0.0
        %310 = vmatprep.subr.mxu0 0.0
        %311 = vmatpush2.msra.mxu0 0.0
        %312 = vmatprep.mubr.f32.mxu0 0.0
        %v313 = vand.u32 %v199, 4294901760
        %v314 = vsub.f32 %v199, %v313
        %v315 = vand.u32 %v314, 4294901760
        %v316 = vsub.f32 %v314, %v315
        %v317 = vand.u32 %v316, 4294901760
        %318 = vmatmul.mubr.f32.gmra.mxu0 %v317
        %v319 = vpop.f32.mrf.mxu0
        %v320 = vadd.f32 %v195, %v319
        %v321 = vpop.f32.mrf.mxu0
        %322 = vmatprep.mubr.f32.mxu0 0.0
        %v323 = vand.u32 %v202, 4294901760
        %v324 = vsub.f32 %v202, %v323
        %v325 = vand.u32 %v324, 4294901760
        %v326 = vsub.f32 %v324, %v325
        %v327 = vand.u32 %v326, 4294901760
        %328 = vmatmul.mubr.f32.gmra.mxu0 %v327
        %v329 = vpop.f32.mrf.mxu0
        %v330 = vadd.f32 %v195, %v329
        %v331 = vpop.f32.mrf.mxu0
        %332 = vmatprep.mubr.f32.mxu0 0.0
        %v333 = vand.u32 %v205, 4294901760
        %v334 = vsub.f32 %v205, %v333
        %v335 = vand.u32 %v334, 4294901760
        %v336 = vsub.f32 %v334, %v335
        %v337 = vand.u32 %v336, 4294901760
        %338 = vmatmul.mubr.f32.gmra.mxu0 %v337
        %v339 = vpop.f32.mrf.mxu0
        %v340 = vadd.f32 %v195, %v339
        %v341 = vpop.f32.mrf.mxu0
        %342 = vmatprep.mubr.f32.mxu0 0.0
        %v343 = vand.u32 %v208, 4294901760
        %v344 = vsub.f32 %v208, %v343
        %v345 = vand.u32 %v344, 4294901760
        %v346 = vsub.f32 %v344, %v345
        %v347 = vand.u32 %v346, 4294901760
        %348 = vmatmul.mubr.f32.gmra.mxu0 %v347
        %v349 = vpop.f32.mrf.mxu0
        %v350 = vadd.f32 %v195, %v349
        %v351 = vpop.f32.mrf.mxu0
        %352 = vmatprep.mubr.f32.mxu0 0.0
        %v353 = vand.u32 %v211, 4294901760
        %v354 = vsub.f32 %v211, %v353
        %v355 = vand.u32 %v354, 4294901760
        %v356 = vsub.f32 %v354, %v355
        %v357 = vand.u32 %v356, 4294901760
        %358 = vmatmul.mubr.f32.gmra.mxu0 %v357
        %v359 = vpop.f32.mrf.mxu0
        %v360 = vadd.f32 %v195, %v359
        %v361 = vpop.f32.mrf.mxu0
        %362 = vmatprep.mubr.f32.mxu0 0.0
        %v363 = vand.u32 %v214, 4294901760
        %v364 = vsub.f32 %v214, %v363
        %v365 = vand.u32 %v364, 4294901760
        %v366 = vsub.f32 %v364, %v365
        %v367 = vand.u32 %v366, 4294901760
        %368 = vmatmul.mubr.f32.gmra.mxu0 %v367
        %v369 = vpop.f32.mrf.mxu0
        %v370 = vadd.f32 %v195, %v369
        %v371 = vpop.f32.mrf.mxu0
        %372 = vmatprep.mubr.f32.mxu0 0.0
        %v373 = vand.u32 %v217, 4294901760
        %v374 = vsub.f32 %v217, %v373
        %v375 = vand.u32 %v374, 4294901760
        %v376 = vsub.f32 %v374, %v375
        %v377 = vand.u32 %v376, 4294901760
        %378 = vmatmul.mubr.f32.gmra.mxu0 %v377
        %v379 = vpop.f32.mrf.mxu0
        %v380 = vadd.f32 %v195, %v379
        %v381 = vpop.f32.mrf.mxu0
        %382 = vmatprep.mubr.f32.mxu0 0.0
        %v383 = vand.u32 %v220, 4294901760
        %v384 = vsub.f32 %v220, %v383
        %v385 = vand.u32 %v384, 4294901760
        %v386 = vsub.f32 %v384, %v385
        %v387 = vand.u32 %v386, 4294901760
        %388 = vmatmul.mubr.f32.gmra.mxu0 %v387
        %v389 = vpop.f32.mrf.mxu0
        %v390 = vadd.f32 %v195, %v389
        %v391 = vpop.f32.mrf.mxu0
        %392 = vmatprep.mubr.f32.mxu0 0.0
        %v393 = vand.u32 %v223, 4294901760
        %v394 = vsub.f32 %v223, %v393
        %v395 = vand.u32 %v394, 4294901760
        %v396 = vsub.f32 %v394, %v395
        %v397 = vand.u32 %v396, 4294901760
        %398 = vmatmul.mubr.f32.gmra.mxu0 %v397
        %v399 = vpop.f32.mrf.mxu0
        %v400 = vadd.f32 %v195, %v399
        %v401 = vpop.f32.mrf.mxu0
        %402 = vmatprep.mubr.f32.mxu0 0.0
        %v403 = vand.u32 %v226, 4294901760
        %v404 = vsub.f32 %v226, %v403
        %v405 = vand.u32 %v404, 4294901760
        %v406 = vsub.f32 %v404, %v405
        %v407 = vand.u32 %v406, 4294901760
        %408 = vmatmul.mubr.f32.gmra.mxu0 %v407
        %v409 = vpop.f32.mrf.mxu0
        %v410 = vadd.f32 %v195, %v409
        %v411 = vpop.f32.mrf.mxu0
        %412 = vmatprep.mubr.f32.mxu0 0.0
        %v413 = vand.u32 %v229, 4294901760
        %v414 = vsub.f32 %v229, %v413
        %v415 = vand.u32 %v414, 4294901760
        %v416 = vsub.f32 %v414, %v415
        %v417 = vand.u32 %v416, 4294901760
        %418 = vmatmul.mubr.f32.gmra.mxu0 %v417
        %v419 = vpop.f32.mrf.mxu0
        %v420 = vadd.f32 %v195, %v419
        %v421 = vpop.f32.mrf.mxu0
        %422 = vmatprep.mubr.f32.mxu0 0.0
        %v423 = vand.u32 %v232, 4294901760
        %v424 = vsub.f32 %v232, %v423
        %v425 = vand.u32 %v424, 4294901760
        %v426 = vsub.f32 %v424, %v425
        %v427 = vand.u32 %v426, 4294901760
        %428 = vmatmul.mubr.f32.gmra.mxu0 %v427
        %v429 = vpop.f32.mrf.mxu0
        %v430 = vadd.f32 %v195, %v429
        %v431 = vpop.f32.mrf.mxu0
        %432 = vmatprep.mubr.f32.mxu0 0.0
        %v433 = vand.u32 %v235, 4294901760
        %v434 = vsub.f32 %v235, %v433
        %v435 = vand.u32 %v434, 4294901760
        %v436 = vsub.f32 %v434, %v435
        %v437 = vand.u32 %v436, 4294901760
        %438 = vmatmul.mubr.f32.gmra.mxu0 %v437
        %v439 = vpop.f32.mrf.mxu0
        %v440 = vadd.f32 %v195, %v439
        %v441 = vpop.f32.mrf.mxu0
        %442 = vmatprep.mubr.f32.mxu0 0.0
        %v443 = vand.u32 %v238, 4294901760
        %v444 = vsub.f32 %v238, %v443
        %v445 = vand.u32 %v444, 4294901760
        %v446 = vsub.f32 %v444, %v445
        %v447 = vand.u32 %v446, 4294901760
        %448 = vmatmul.mubr.f32.gmra.mxu0 %v447
        %v449 = vpop.f32.mrf.mxu0
        %v450 = vadd.f32 %v195, %v449
        %v451 = vpop.f32.mrf.mxu0
        %452 = vmatprep.mubr.f32.mxu0 0.0
        %v453 = vand.u32 %v241, 4294901760
        %v454 = vsub.f32 %v241, %v453
        %v455 = vand.u32 %v454, 4294901760
        %v456 = vsub.f32 %v454, %v455
        %v457 = vand.u32 %v456, 4294901760
        %458 = vmatmul.mubr.f32.gmra.mxu0 %v457
        %v459 = vpop.f32.mrf.mxu0
        %v460 = vadd.f32 %v195, %v459
        %v461 = vpop.f32.mrf.mxu0
        %462 = vmatprep.mubr.f32.mxu0 0.0
        %v463 = vand.u32 %v244, 4294901760
        %v464 = vsub.f32 %v244, %v463
        %v465 = vand.u32 %v464, 4294901760
        %v466 = vsub.f32 %v464, %v465
        %v467 = vand.u32 %v466, 4294901760
        %468 = vmatmul.mubr.f32.gmra.mxu0 %v467
        %v469 = vpop.f32.mrf.mxu0
        %v470 = vadd.f32 %v195, %v469
        %v471 = vpop.f32.mrf.mxu0
        %472 = vdwg.mxu0
        %473 = vmatprep.subr.mxu0 0.0
        %474 = vmatpush1.msra.mxu0 0.0
        %475 = vmatprep.subr.mxu0 0.0
        %476 = vmatpush1.msra.mxu0 0.0
        %477 = vmatprep.subr.mxu0 0.0
        %478 = vmatpush1.msra.mxu0 0.0
        %479 = vmatprep.subr.mxu0 0.0
        %480 = vmatpush1.msra.mxu0 0.0
        %481 = vmatprep.subr.mxu0 0.0
        %482 = vmatpush1.msra.mxu0 0.0
        %483 = vmatprep.subr.mxu0 0.0
        %484 = vmatpush1.msra.mxu0 0.0
        %485 = vmatprep.subr.mxu0 0.0
        %486 = vmatpush1.msra.mxu0 0.0
        %487 = vmatprep.subr.mxu0 0.0
        %488 = vmatpush1.msra.mxu0 0.0
        %489 = vmatprep.subr.mxu0 0.0
        %490 = vmatpush1.msra.mxu0 0.0
        %491 = vmatprep.subr.mxu0 0.0
        %492 = vmatpush1.msra.mxu0 0.0
        %493 = vmatprep.subr.mxu0 0.0
        %494 = vmatpush1.msra.mxu0 0.0
        %495 = vmatprep.subr.mxu0 0.0
        %496 = vmatpush1.msra.mxu0 0.0
        %497 = vmatprep.subr.mxu0 0.0
        %498 = vmatpush1.msra.mxu0 0.0
        %499 = vmatprep.subr.mxu0 0.0
        %500 = vmatpush1.msra.mxu0 0.0
        %501 = vmatprep.subr.mxu0 0.0
        %v502 = vand.u32 %v189, 4294901760
        %v503 = vsub.f32 %v189, %v502
        %v504 = vand.u32 %v503, 4294901760
        %v505 = vsub.f32 %v503, %v504
        %v506 = vand.u32 %v505, 4294901760
        %507 = vmatpush1.msra.mxu0 %v506
        %508 = vmatprep.subr.mxu0 0.0
        %v509 = vand.u32 %v188, 4294901760
        %v510 = vsub.f32 %v188, %v509
        %v511 = vand.u32 %v510, 4294901760
        %v512 = vsub.f32 %v510, %v511
        %v513 = vand.u32 %v512, 4294901760
        %514 = vmatpush1.msra.mxu0 %v513
        %515 = vmatprep.subr.mxu0 0.0
        %516 = vmatpush2.msra.mxu0 0.0
        %517 = vmatprep.subr.mxu0 0.0
        %518 = vmatpush2.msra.mxu0 0.0
        %519 = vmatprep.subr.mxu0 0.0
        %520 = vmatpush2.msra.mxu0 0.0
        %521 = vmatprep.subr.mxu0 0.0
        %522 = vmatpush2.msra.mxu0 0.0
        %523 = vmatprep.subr.mxu0 0.0
        %524 = vmatpush2.msra.mxu0 0.0
        %525 = vmatprep.subr.mxu0 0.0
        %526 = vmatpush2.msra.mxu0 0.0
        %527 = vmatprep.subr.mxu0 0.0
        %528 = vmatpush2.msra.mxu0 0.0
        %529 = vmatprep.subr.mxu0 0.0
        %530 = vmatpush2.msra.mxu0 0.0
        %531 = vmatprep.subr.mxu0 0.0
        %532 = vmatpush2.msra.mxu0 0.0
        %533 = vmatprep.subr.mxu0 0.0
        %534 = vmatpush2.msra.mxu0 0.0
        %535 = vmatprep.subr.mxu0 0.0
        %536 = vmatpush2.msra.mxu0 0.0
        %537 = vmatprep.subr.mxu0 0.0
        %538 = vmatpush2.msra.mxu0 0.0
        %539 = vmatprep.subr.mxu0 0.0
        %540 = vmatpush2.msra.mxu0 0.0
        %541 = vmatprep.subr.mxu0 0.0
        %542 = vmatpush2.msra.mxu0 0.0
        %543 = vmatprep.subr.mxu0 0.0
        %544 = vmatpush2.msra.mxu0 0.0
        %545 = vmatprep.subr.mxu0 0.0
        %546 = vmatpush2.msra.mxu0 0.0
        %547 = vmatprep.mubr.f32.mxu0 0.0
        %v548 = vand.u32 %v199, 4294901760
        %549 = vmatmul.mubr.f32.gmra.mxu0 %v548
        %v550 = vpop.f32.mrf.mxu0
        %v551 = vadd.f32 %v320, %v550
        %v552 = vpop.f32.mrf.mxu0
        %553 = vmatprep.mubr.f32.mxu0 0.0
        %v554 = vand.u32 %v202, 4294901760
        %555 = vmatmul.mubr.f32.gmra.mxu0 %v554
        %v556 = vpop.f32.mrf.mxu0
        %v557 = vadd.f32 %v330, %v556
        %v558 = vpop.f32.mrf.mxu0
        %559 = vmatprep.mubr.f32.mxu0 0.0
        %v560 = vand.u32 %v205, 4294901760
        %561 = vmatmul.mubr.f32.gmra.mxu0 %v560
        %v562 = vpop.f32.mrf.mxu0
        %v563 = vadd.f32 %v340, %v562
        %v564 = vpop.f32.mrf.mxu0
        %565 = vmatprep.mubr.f32.mxu0 0.0
        %v566 = vand.u32 %v208, 4294901760
        %567 = vmatmul.mubr.f32.gmra.mxu0 %v566
        %v568 = vpop.f32.mrf.mxu0
        %v569 = vadd.f32 %v350, %v568
        %v570 = vpop.f32.mrf.mxu0
        %571 = vmatprep.mubr.f32.mxu0 0.0
        %v572 = vand.u32 %v211, 4294901760
        %573 = vmatmul.mubr.f32.gmra.mxu0 %v572
        %v574 = vpop.f32.mrf.mxu0
        %v575 = vadd.f32 %v360, %v574
        %v576 = vpop.f32.mrf.mxu0
        %577 = vmatprep.mubr.f32.mxu0 0.0
        %v578 = vand.u32 %v214, 4294901760
        %579 = vmatmul.mubr.f32.gmra.mxu0 %v578
        %v580 = vpop.f32.mrf.mxu0
        %v581 = vadd.f32 %v370, %v580
        %v582 = vpop.f32.mrf.mxu0
        %583 = vmatprep.mubr.f32.mxu0 0.0
        %v584 = vand.u32 %v217, 4294901760
        %585 = vmatmul.mubr.f32.gmra.mxu0 %v584
        %v586 = vpop.f32.mrf.mxu0
        %v587 = vadd.f32 %v380, %v586
        %v588 = vpop.f32.mrf.mxu0
        %589 = vmatprep.mubr.f32.mxu0 0.0
        %v590 = vand.u32 %v220, 4294901760
        %591 = vmatmul.mubr.f32.gmra.mxu0 %v590
        %v592 = vpop.f32.mrf.mxu0
        %v593 = vadd.f32 %v390, %v592
        %v594 = vpop.f32.mrf.mxu0
        %595 = vmatprep.mubr.f32.mxu0 0.0
        %v596 = vand.u32 %v223, 4294901760
        %597 = vmatmul.mubr.f32.gmra.mxu0 %v596
        %v598 = vpop.f32.mrf.mxu0
        %v599 = vadd.f32 %v400, %v598
        %v600 = vpop.f32.mrf.mxu0
        %601 = vmatprep.mubr.f32.mxu0 0.0
        %v602 = vand.u32 %v226, 4294901760
        %603 = vmatmul.mubr.f32.gmra.mxu0 %v602
        %v604 = vpop.f32.mrf.mxu0
        %v605 = vadd.f32 %v410, %v604
        %v606 = vpop.f32.mrf.mxu0
        %607 = vmatprep.mubr.f32.mxu0 0.0
        %v608 = vand.u32 %v229, 4294901760
        %609 = vmatmul.mubr.f32.gmra.mxu0 %v608
        %v610 = vpop.f32.mrf.mxu0
        %v611 = vadd.f32 %v420, %v610
        %v612 = vpop.f32.mrf.mxu0
        %613 = vmatprep.mubr.f32.mxu0 0.0
        %v614 = vand.u32 %v232, 4294901760
        %615 = vmatmul.mubr.f32.gmra.mxu0 %v614
        %v616 = vpop.f32.mrf.mxu0
        %v617 = vadd.f32 %v430, %v616
        %v618 = vpop.f32.mrf.mxu0
        %619 = vmatprep.mubr.f32.mxu0 0.0
        %v620 = vand.u32 %v235, 4294901760
        %621 = vmatmul.mubr.f32.gmra.mxu0 %v620
        %v622 = vpop.f32.mrf.mxu0
        %v623 = vadd.f32 %v440, %v622
        %v624 = vpop.f32.mrf.mxu0
        %625 = vmatprep.mubr.f32.mxu0 0.0
        %v626 = vand.u32 %v238, 4294901760
        %627 = vmatmul.mubr.f32.gmra.mxu0 %v626
        %v628 = vpop.f32.mrf.mxu0
        %v629 = vadd.f32 %v450, %v628
        %v630 = vpop.f32.mrf.mxu0
        %631 = vmatprep.mubr.f32.mxu0 0.0
        %v632 = vand.u32 %v241, 4294901760
        %633 = vmatmul.mubr.f32.gmra.mxu0 %v632
        %v634 = vpop.f32.mrf.mxu0
        %v635 = vadd.f32 %v460, %v634
        %v636 = vpop.f32.mrf.mxu0
        %637 = vmatprep.mubr.f32.mxu0 0.0
        %v638 = vand.u32 %v244, 4294901760
        %639 = vmatmul.mubr.f32.gmra.mxu0 %v638
        %v640 = vpop.f32.mrf.mxu0
        %v641 = vadd.f32 %v470, %v640
        %v642 = vpop.f32.mrf.mxu0
        %643 = vdwg.mxu0
        %644 = vmatprep.subr.mxu0 0.0
        %645 = vmatpush1.msra.mxu0 0.0
        %646 = vmatprep.subr.mxu0 0.0
        %647 = vmatpush1.msra.mxu0 0.0
        %648 = vmatprep.subr.mxu0 0.0
        %649 = vmatpush1.msra.mxu0 0.0
        %650 = vmatprep.subr.mxu0 0.0
        %651 = vmatpush1.msra.mxu0 0.0
        %652 = vmatprep.subr.mxu0 0.0
        %653 = vmatpush1.msra.mxu0 0.0
        %654 = vmatprep.subr.mxu0 0.0
        %655 = vmatpush1.msra.mxu0 0.0
        %656 = vmatprep.subr.mxu0 0.0
        %657 = vmatpush1.msra.mxu0 0.0
        %658 = vmatprep.subr.mxu0 0.0
        %659 = vmatpush1.msra.mxu0 0.0
        %660 = vmatprep.subr.mxu0 0.0
        %661 = vmatpush1.msra.mxu0 0.0
        %662 = vmatprep.subr.mxu0 0.0
        %663 = vmatpush1.msra.mxu0 0.0
        %664 = vmatprep.subr.mxu0 0.0
        %665 = vmatpush1.msra.mxu0 0.0
        %666 = vmatprep.subr.mxu0 0.0
        %667 = vmatpush1.msra.mxu0 0.0
        %668 = vmatprep.subr.mxu0 0.0
        %669 = vmatpush1.msra.mxu0 0.0
        %670 = vmatprep.subr.mxu0 0.0
        %671 = vmatpush1.msra.mxu0 0.0
        %672 = vmatprep.subr.mxu0 0.0
        %v673 = vand.u32 %v189, 4294901760
        %v674 = vsub.f32 %v189, %v673
        %675 = vmatpush1.msra.mxu0 %v674
        %676 = vmatprep.subr.mxu0 0.0
        %v677 = vand.u32 %v188, 4294901760
        %v678 = vsub.f32 %v188, %v677
        %679 = vmatpush1.msra.mxu0 %v678
        %680 = vmatprep.subr.mxu0 0.0
        %681 = vmatpush2.msra.mxu0 0.0
        %682 = vmatprep.subr.mxu0 0.0
        %683 = vmatpush2.msra.mxu0 0.0
        %684 = vmatprep.subr.mxu0 0.0
        %685 = vmatpush2.msra.mxu0 0.0
        %686 = vmatprep.subr.mxu0 0.0
        %687 = vmatpush2.msra.mxu0 0.0
        %688 = vmatprep.subr.mxu0 0.0
        %689 = vmatpush2.msra.mxu0 0.0
        %690 = vmatprep.subr.mxu0 0.0
        %691 = vmatpush2.msra.mxu0 0.0
        %692 = vmatprep.subr.mxu0 0.0
        %693 = vmatpush2.msra.mxu0 0.0
        %694 = vmatprep.subr.mxu0 0.0
        %695 = vmatpush2.msra.mxu0 0.0
        %696 = vmatprep.subr.mxu0 0.0
        %697 = vmatpush2.msra.mxu0 0.0
        %698 = vmatprep.subr.mxu0 0.0
        %699 = vmatpush2.msra.mxu0 0.0
        %700 = vmatprep.subr.mxu0 0.0
        %701 = vmatpush2.msra.mxu0 0.0
        %702 = vmatprep.subr.mxu0 0.0
        %703 = vmatpush2.msra.mxu0 0.0
        %704 = vmatprep.subr.mxu0 0.0
        %705 = vmatpush2.msra.mxu0 0.0
        %706 = vmatprep.subr.mxu0 0.0
        %707 = vmatpush2.msra.mxu0 0.0
        %708 = vmatprep.subr.mxu0 0.0
        %709 = vmatpush2.msra.mxu0 0.0
        %710 = vmatprep.subr.mxu0 0.0
        %711 = vmatpush2.msra.mxu0 0.0
        %712 = vmatprep.mubr.f32.mxu0 0.0
        %v713 = vand.u32 %v199, 4294901760
        %v714 = vsub.f32 %v199, %v713
        %715 = vmatmul.mubr.f32.gmra.mxu0 %v714
        %v716 = vpop.f32.mrf.mxu0
        %v717 = vadd.f32 %v551, %v716
        %v718 = vpop.f32.mrf.mxu0
        %719 = vmatprep.mubr.f32.mxu0 0.0
        %v720 = vand.u32 %v202, 4294901760
        %v721 = vsub.f32 %v202, %v720
        %722 = vmatmul.mubr.f32.gmra.mxu0 %v721
        %v723 = vpop.f32.mrf.mxu0
        %v724 = vadd.f32 %v557, %v723
        %v725 = vpop.f32.mrf.mxu0
        %726 = vmatprep.mubr.f32.mxu0 0.0
        %v727 = vand.u32 %v205, 4294901760
        %v728 = vsub.f32 %v205, %v727
        %729 = vmatmul.mubr.f32.gmra.mxu0 %v728
        %v730 = vpop.f32.mrf.mxu0
        %v731 = vadd.f32 %v563, %v730
        %v732 = vpop.f32.mrf.mxu0
        %733 = vmatprep.mubr.f32.mxu0 0.0
        %v734 = vand.u32 %v208, 4294901760
        %v735 = vsub.f32 %v208, %v734
        %736 = vmatmul.mubr.f32.gmra.mxu0 %v735
        %v737 = vpop.f32.mrf.mxu0
        %v738 = vadd.f32 %v569, %v737
        %v739 = vpop.f32.mrf.mxu0
        %740 = vmatprep.mubr.f32.mxu0 0.0
        %v741 = vand.u32 %v211, 4294901760
        %v742 = vsub.f32 %v211, %v741
        %743 = vmatmul.mubr.f32.gmra.mxu0 %v742
        %v744 = vpop.f32.mrf.mxu0
        %v745 = vadd.f32 %v575, %v744
        %v746 = vpop.f32.mrf.mxu0
        %747 = vmatprep.mubr.f32.mxu0 0.0
        %v748 = vand.u32 %v214, 4294901760
        %v749 = vsub.f32 %v214, %v748
        %750 = vmatmul.mubr.f32.gmra.mxu0 %v749
        %v751 = vpop.f32.mrf.mxu0
        %v752 = vadd.f32 %v581, %v751
        %v753 = vpop.f32.mrf.mxu0
        %754 = vmatprep.mubr.f32.mxu0 0.0
        %v755 = vand.u32 %v217, 4294901760
        %v756 = vsub.f32 %v217, %v755
        %757 = vmatmul.mubr.f32.gmra.mxu0 %v756
        %v758 = vpop.f32.mrf.mxu0
        %v759 = vadd.f32 %v587, %v758
        %v760 = vpop.f32.mrf.mxu0
        %761 = vmatprep.mubr.f32.mxu0 0.0
        %v762 = vand.u32 %v220, 4294901760
        %v763 = vsub.f32 %v220, %v762
        %764 = vmatmul.mubr.f32.gmra.mxu0 %v763
        %v765 = vpop.f32.mrf.mxu0
        %v766 = vadd.f32 %v593, %v765
        %v767 = vpop.f32.mrf.mxu0
        %768 = vmatprep.mubr.f32.mxu0 0.0
        %v769 = vand.u32 %v223, 4294901760
        %v770 = vsub.f32 %v223, %v769
        %771 = vmatmul.mubr.f32.gmra.mxu0 %v770
        %v772 = vpop.f32.mrf.mxu0
        %v773 = vadd.f32 %v599, %v772
        %v774 = vpop.f32.mrf.mxu0
        %775 = vmatprep.mubr.f32.mxu0 0.0
        %v776 = vand.u32 %v226, 4294901760
        %v777 = vsub.f32 %v226, %v776
        %778 = vmatmul.mubr.f32.gmra.mxu0 %v777
        %v779 = vpop.f32.mrf.mxu0
        %v780 = vadd.f32 %v605, %v779
        %v781 = vpop.f32.mrf.mxu0
        %782 = vmatprep.mubr.f32.mxu0 0.0
        %v783 = vand.u32 %v229, 4294901760
        %v784 = vsub.f32 %v229, %v783
        %785 = vmatmul.mubr.f32.gmra.mxu0 %v784
        %v786 = vpop.f32.mrf.mxu0
        %v787 = vadd.f32 %v611, %v786
        %v788 = vpop.f32.mrf.mxu0
        %789 = vmatprep.mubr.f32.mxu0 0.0
        %v790 = vand.u32 %v232, 4294901760
        %v791 = vsub.f32 %v232, %v790
        %792 = vmatmul.mubr.f32.gmra.mxu0 %v791
        %v793 = vpop.f32.mrf.mxu0
        %v794 = vadd.f32 %v617, %v793
        %v795 = vpop.f32.mrf.mxu0
        %796 = vmatprep.mubr.f32.mxu0 0.0
        %v797 = vand.u32 %v235, 4294901760
        %v798 = vsub.f32 %v235, %v797
        %799 = vmatmul.mubr.f32.gmra.mxu0 %v798
        %v800 = vpop.f32.mrf.mxu0
        %v801 = vadd.f32 %v623, %v800
        %v802 = vpop.f32.mrf.mxu0
        %803 = vmatprep.mubr.f32.mxu0 0.0
        %v804 = vand.u32 %v238, 4294901760
        %v805 = vsub.f32 %v238, %v804
        %806 = vmatmul.mubr.f32.gmra.mxu0 %v805
        %v807 = vpop.f32.mrf.mxu0
        %v808 = vadd.f32 %v629, %v807
        %v809 = vpop.f32.mrf.mxu0
        %810 = vmatprep.mubr.f32.mxu0 0.0
        %v811 = vand.u32 %v241, 4294901760
        %v812 = vsub.f32 %v241, %v811
        %813 = vmatmul.mubr.f32.gmra.mxu0 %v812
        %v814 = vpop.f32.mrf.mxu0
        %v815 = vadd.f32 %v635, %v814
        %v816 = vpop.f32.mrf.mxu0
        %817 = vmatprep.mubr.f32.mxu0 0.0
        %v818 = vand.u32 %v244, 4294901760
        %v819 = vsub.f32 %v244, %v818
        %820 = vmatmul.mubr.f32.gmra.mxu0 %v819
        %v821 = vpop.f32.mrf.mxu0
        %v822 = vadd.f32 %v641, %v821
        %v823 = vpop.f32.mrf.mxu0
        %824 = vdwg.mxu0
        %825 = vmatprep.subr.mxu0 0.0
        %826 = vmatpush1.msra.mxu0 0.0
        %827 = vmatprep.subr.mxu0 0.0
        %828 = vmatpush1.msra.mxu0 0.0
        %829 = vmatprep.subr.mxu0 0.0
        %830 = vmatpush1.msra.mxu0 0.0
        %831 = vmatprep.subr.mxu0 0.0
        %832 = vmatpush1.msra.mxu0 0.0
        %833 = vmatprep.subr.mxu0 0.0
        %834 = vmatpush1.msra.mxu0 0.0
        %835 = vmatprep.subr.mxu0 0.0
        %836 = vmatpush1.msra.mxu0 0.0
        %837 = vmatprep.subr.mxu0 0.0
        %838 = vmatpush1.msra.mxu0 0.0
        %839 = vmatprep.subr.mxu0 0.0
        %840 = vmatpush1.msra.mxu0 0.0
        %841 = vmatprep.subr.mxu0 0.0
        %842 = vmatpush1.msra.mxu0 0.0
        %843 = vmatprep.subr.mxu0 0.0
        %844 = vmatpush1.msra.mxu0 0.0
        %845 = vmatprep.subr.mxu0 0.0
        %846 = vmatpush1.msra.mxu0 0.0
        %847 = vmatprep.subr.mxu0 0.0
        %848 = vmatpush1.msra.mxu0 0.0
        %849 = vmatprep.subr.mxu0 0.0
        %850 = vmatpush1.msra.mxu0 0.0
        %851 = vmatprep.subr.mxu0 0.0
        %852 = vmatpush1.msra.mxu0 0.0
        %853 = vmatprep.subr.mxu0 0.0
        %v854 = vand.u32 %v189, 4294901760
        %855 = vmatpush1.msra.mxu0 %v854
        %856 = vmatprep.subr.mxu0 0.0
        %v857 = vand.u32 %v188, 4294901760
        %858 = vmatpush1.msra.mxu0 %v857
        %859 = vmatprep.subr.mxu0 0.0
        %860 = vmatpush2.msra.mxu0 0.0
        %861 = vmatprep.subr.mxu0 0.0
        %862 = vmatpush2.msra.mxu0 0.0
        %863 = vmatprep.subr.mxu0 0.0
        %864 = vmatpush2.msra.mxu0 0.0
        %865 = vmatprep.subr.mxu0 0.0
        %866 = vmatpush2.msra.mxu0 0.0
        %867 = vmatprep.subr.mxu0 0.0
        %868 = vmatpush2.msra.mxu0 0.0
        %869 = vmatprep.subr.mxu0 0.0
        %870 = vmatpush2.msra.mxu0 0.0
        %871 = vmatprep.subr.mxu0 0.0
        %872 = vmatpush2.msra.mxu0 0.0
        %873 = vmatprep.subr.mxu0 0.0
        %874 = vmatpush2.msra.mxu0 0.0
        %875 = vmatprep.subr.mxu0 0.0
        %876 = vmatpush2.msra.mxu0 0.0
        %877 = vmatprep.subr.mxu0 0.0
        %878 = vmatpush2.msra.mxu0 0.0
        %879 = vmatprep.subr.mxu0 0.0
        %880 = vmatpush2.msra.mxu0 0.0
        %881 = vmatprep.subr.mxu0 0.0
        %882 = vmatpush2.msra.mxu0 0.0
        %883 = vmatprep.subr.mxu0 0.0
        %884 = vmatpush2.msra.mxu0 0.0
        %885 = vmatprep.subr.mxu0 0.0
        %886 = vmatpush2.msra.mxu0 0.0
        %887 = vmatprep.subr.mxu0 0.0
        %888 = vmatpush2.msra.mxu0 0.0
        %889 = vmatprep.subr.mxu0 0.0
        %890 = vmatpush2.msra.mxu0 0.0
        %891 = vmatprep.mubr.f32.mxu0 0.0
        %v892 = vand.u32 %v199, 4294901760
        %v893 = vsub.f32 %v199, %v892
        %v894 = vand.u32 %v893, 4294901760
        %895 = vmatmul.mubr.f32.gmra.mxu0 %v894
        %v896 = vpop.f32.mrf.mxu0
        %v897 = vadd.f32 %v717, %v896
        %v898 = vpop.f32.mrf.mxu0
        %899 = vmatprep.mubr.f32.mxu0 0.0
        %v900 = vand.u32 %v202, 4294901760
        %v901 = vsub.f32 %v202, %v900
        %v902 = vand.u32 %v901, 4294901760
        %903 = vmatmul.mubr.f32.gmra.mxu0 %v902
        %v904 = vpop.f32.mrf.mxu0
        %v905 = vadd.f32 %v724, %v904
        %v906 = vpop.f32.mrf.mxu0
        %907 = vmatprep.mubr.f32.mxu0 0.0
        %v908 = vand.u32 %v205, 4294901760
        %v909 = vsub.f32 %v205, %v908
        %v910 = vand.u32 %v909, 4294901760
        %911 = vmatmul.mubr.f32.gmra.mxu0 %v910
        %v912 = vpop.f32.mrf.mxu0
        %v913 = vadd.f32 %v731, %v912
        %v914 = vpop.f32.mrf.mxu0
        %915 = vmatprep.mubr.f32.mxu0 0.0
        %v916 = vand.u32 %v208, 4294901760
        %v917 = vsub.f32 %v208, %v916
        %v918 = vand.u32 %v917, 4294901760
        %919 = vmatmul.mubr.f32.gmra.mxu0 %v918
        %v920 = vpop.f32.mrf.mxu0
        %v921 = vadd.f32 %v738, %v920
        %v922 = vpop.f32.mrf.mxu0
        %923 = vmatprep.mubr.f32.mxu0 0.0
        %v924 = vand.u32 %v211, 4294901760
        %v925 = vsub.f32 %v211, %v924
        %v926 = vand.u32 %v925, 4294901760
        %927 = vmatmul.mubr.f32.gmra.mxu0 %v926
        %v928 = vpop.f32.mrf.mxu0
        %v929 = vadd.f32 %v745, %v928
        %v930 = vpop.f32.mrf.mxu0
        %931 = vmatprep.mubr.f32.mxu0 0.0
        %v932 = vand.u32 %v214, 4294901760
        %v933 = vsub.f32 %v214, %v932
        %v934 = vand.u32 %v933, 4294901760
        %935 = vmatmul.mubr.f32.gmra.mxu0 %v934
        %v936 = vpop.f32.mrf.mxu0
        %v937 = vadd.f32 %v752, %v936
        %v938 = vpop.f32.mrf.mxu0
        %939 = vmatprep.mubr.f32.mxu0 0.0
        %v940 = vand.u32 %v217, 4294901760
        %v941 = vsub.f32 %v217, %v940
        %v942 = vand.u32 %v941, 4294901760
        %943 = vmatmul.mubr.f32.gmra.mxu0 %v942
        %v944 = vpop.f32.mrf.mxu0
        %v945 = vadd.f32 %v759, %v944
        %v946 = vpop.f32.mrf.mxu0
        %947 = vmatprep.mubr.f32.mxu0 0.0
        %v948 = vand.u32 %v220, 4294901760
        %v949 = vsub.f32 %v220, %v948
        %v950 = vand.u32 %v949, 4294901760
        %951 = vmatmul.mubr.f32.gmra.mxu0 %v950
        %v952 = vpop.f32.mrf.mxu0
        %v953 = vadd.f32 %v766, %v952
        %v954 = vpop.f32.mrf.mxu0
        %955 = vmatprep.mubr.f32.mxu0 0.0
        %v956 = vand.u32 %v223, 4294901760
        %v957 = vsub.f32 %v223, %v956
        %v958 = vand.u32 %v957, 4294901760
        %959 = vmatmul.mubr.f32.gmra.mxu0 %v958
        %v960 = vpop.f32.mrf.mxu0
        %v961 = vadd.f32 %v773, %v960
        %v962 = vpop.f32.mrf.mxu0
        %963 = vmatprep.mubr.f32.mxu0 0.0
        %v964 = vand.u32 %v226, 4294901760
        %v965 = vsub.f32 %v226, %v964
        %v966 = vand.u32 %v965, 4294901760
        %967 = vmatmul.mubr.f32.gmra.mxu0 %v966
        %v968 = vpop.f32.mrf.mxu0
        %v969 = vadd.f32 %v780, %v968
        %v970 = vpop.f32.mrf.mxu0
        %971 = vmatprep.mubr.f32.mxu0 0.0
        %v972 = vand.u32 %v229, 4294901760
        %v973 = vsub.f32 %v229, %v972
        %v974 = vand.u32 %v973, 4294901760
        %975 = vmatmul.mubr.f32.gmra.mxu0 %v974
        %v976 = vpop.f32.mrf.mxu0
        %v977 = vadd.f32 %v787, %v976
        %v978 = vpop.f32.mrf.mxu0
        %979 = vmatprep.mubr.f32.mxu0 0.0
        %v980 = vand.u32 %v232, 4294901760
        %v981 = vsub.f32 %v232, %v980
        %v982 = vand.u32 %v981, 4294901760
        %983 = vmatmul.mubr.f32.gmra.mxu0 %v982
        %v984 = vpop.f32.mrf.mxu0
        %v985 = vadd.f32 %v794, %v984
        %v986 = vpop.f32.mrf.mxu0
        %987 = vmatprep.mubr.f32.mxu0 0.0
        %v988 = vand.u32 %v235, 4294901760
        %v989 = vsub.f32 %v235, %v988
        %v990 = vand.u32 %v989, 4294901760
        %991 = vmatmul.mubr.f32.gmra.mxu0 %v990
        %v992 = vpop.f32.mrf.mxu0
        %v993 = vadd.f32 %v801, %v992
        %v994 = vpop.f32.mrf.mxu0
        %995 = vmatprep.mubr.f32.mxu0 0.0
        %v996 = vand.u32 %v238, 4294901760
        %v997 = vsub.f32 %v238, %v996
        %v998 = vand.u32 %v997, 4294901760
        %999 = vmatmul.mubr.f32.gmra.mxu0 %v998
        %v1000 = vpop.f32.mrf.mxu0
        %v1001 = vadd.f32 %v808, %v1000
        %v1002 = vpop.f32.mrf.mxu0
        %1003 = vmatprep.mubr.f32.mxu0 0.0
        %v1004 = vand.u32 %v241, 4294901760
        %v1005 = vsub.f32 %v241, %v1004
        %v1006 = vand.u32 %v1005, 4294901760
        %1007 = vmatmul.mubr.f32.gmra.mxu0 %v1006
        %v1008 = vpop.f32.mrf.mxu0
        %v1009 = vadd.f32 %v815, %v1008
        %v1010 = vpop.f32.mrf.mxu0
        %1011 = vmatprep.mubr.f32.mxu0 0.0
        %v1012 = vand.u32 %v244, 4294901760
        %v1013 = vsub.f32 %v244, %v1012
        %v1014 = vand.u32 %v1013, 4294901760
        %1015 = vmatmul.mubr.f32.gmra.mxu0 %v1014
        %v1016 = vpop.f32.mrf.mxu0
        %v1017 = vadd.f32 %v822, %v1016
        %v1018 = vpop.f32.mrf.mxu0
        %1019 = vdwg.mxu0
        %1020 = vmatprep.subr.mxu0 0.0
        %1021 = vmatpush1.msra.mxu0 0.0
        %1022 = vmatprep.subr.mxu0 0.0
        %1023 = vmatpush1.msra.mxu0 0.0
        %1024 = vmatprep.subr.mxu0 0.0
        %1025 = vmatpush1.msra.mxu0 0.0
        %1026 = vmatprep.subr.mxu0 0.0
        %1027 = vmatpush1.msra.mxu0 0.0
        %1028 = vmatprep.subr.mxu0 0.0
        %1029 = vmatpush1.msra.mxu0 0.0
        %1030 = vmatprep.subr.mxu0 0.0
        %1031 = vmatpush1.msra.mxu0 0.0
        %1032 = vmatprep.subr.mxu0 0.0
        %1033 = vmatpush1.msra.mxu0 0.0
        %1034 = vmatprep.subr.mxu0 0.0
        %1035 = vmatpush1.msra.mxu0 0.0
        %1036 = vmatprep.subr.mxu0 0.0
        %1037 = vmatpush1.msra.mxu0 0.0
        %1038 = vmatprep.subr.mxu0 0.0
        %1039 = vmatpush1.msra.mxu0 0.0
        %1040 = vmatprep.subr.mxu0 0.0
        %1041 = vmatpush1.msra.mxu0 0.0
        %1042 = vmatprep.subr.mxu0 0.0
        %1043 = vmatpush1.msra.mxu0 0.0
        %1044 = vmatprep.subr.mxu0 0.0
        %1045 = vmatpush1.msra.mxu0 0.0
        %1046 = vmatprep.subr.mxu0 0.0
        %1047 = vmatpush1.msra.mxu0 0.0
        %1048 = vmatprep.subr.mxu0 0.0
        %v1049 = vand.u32 %v189, 4294901760
        %v1050 = vsub.f32 %v189, %v1049
        %v1051 = vand.u32 %v1050, 4294901760
        %1052 = vmatpush1.msra.mxu0 %v1051
        %1053 = vmatprep.subr.mxu0 0.0
        %v1054 = vand.u32 %v188, 4294901760
        %v1055 = vsub.f32 %v188, %v1054
        %v1056 = vand.u32 %v1055, 4294901760
        %1057 = vmatpush1.msra.mxu0 %v1056
        %1058 = vmatprep.subr.mxu0 0.0
        %1059 = vmatpush2.msra.mxu0 0.0
        %1060 = vmatprep.subr.mxu0 0.0
        %1061 = vmatpush2.msra.mxu0 0.0
        %1062 = vmatprep.subr.mxu0 0.0
        %1063 = vmatpush2.msra.mxu0 0.0
        %1064 = vmatprep.subr.mxu0 0.0
        %1065 = vmatpush2.msra.mxu0 0.0
        %1066 = vmatprep.subr.mxu0 0.0
        %1067 = vmatpush2.msra.mxu0 0.0
        %1068 = vmatprep.subr.mxu0 0.0
        %1069 = vmatpush2.msra.mxu0 0.0
        %1070 = vmatprep.subr.mxu0 0.0
        %1071 = vmatpush2.msra.mxu0 0.0
        %1072 = vmatprep.subr.mxu0 0.0
        %1073 = vmatpush2.msra.mxu0 0.0
        %1074 = vmatprep.subr.mxu0 0.0
        %1075 = vmatpush2.msra.mxu0 0.0
        %1076 = vmatprep.subr.mxu0 0.0
        %1077 = vmatpush2.msra.mxu0 0.0
        %1078 = vmatprep.subr.mxu0 0.0
        %1079 = vmatpush2.msra.mxu0 0.0
        %1080 = vmatprep.subr.mxu0 0.0
        %1081 = vmatpush2.msra.mxu0 0.0
        %1082 = vmatprep.subr.mxu0 0.0
        %1083 = vmatpush2.msra.mxu0 0.0
        %1084 = vmatprep.subr.mxu0 0.0
        %1085 = vmatpush2.msra.mxu0 0.0
        %1086 = vmatprep.subr.mxu0 0.0
        %1087 = vmatpush2.msra.mxu0 0.0
        %1088 = vmatprep.subr.mxu0 0.0
        %1089 = vmatpush2.msra.mxu0 0.0
        %1090 = vmatprep.mubr.f32.mxu0 0.0
        %v1091 = vand.u32 %v199, 4294901760
        %1092 = vmatmul.mubr.f32.gmra.mxu0 %v1091
        %v1093 = vpop.f32.mrf.mxu0
        %v1094 = vadd.f32 %v897, %v1093
        %v1095 = vpop.f32.mrf.mxu0
        %1096 = vmatprep.mubr.f32.mxu0 0.0
        %v1097 = vand.u32 %v202, 4294901760
        %1098 = vmatmul.mubr.f32.gmra.mxu0 %v1097
        %v1099 = vpop.f32.mrf.mxu0
        %v1100 = vadd.f32 %v905, %v1099
        %v1101 = vpop.f32.mrf.mxu0
        %1102 = vmatprep.mubr.f32.mxu0 0.0
        %v1103 = vand.u32 %v205, 4294901760
        %1104 = vmatmul.mubr.f32.gmra.mxu0 %v1103
        %v1105 = vpop.f32.mrf.mxu0
        %v1106 = vadd.f32 %v913, %v1105
        %v1107 = vpop.f32.mrf.mxu0
        %1108 = vmatprep.mubr.f32.mxu0 0.0
        %v1109 = vand.u32 %v208, 4294901760
        %1110 = vmatmul.mubr.f32.gmra.mxu0 %v1109
        %v1111 = vpop.f32.mrf.mxu0
        %v1112 = vadd.f32 %v921, %v1111
        %v1113 = vpop.f32.mrf.mxu0
        %1114 = vmatprep.mubr.f32.mxu0 0.0
        %v1115 = vand.u32 %v211, 4294901760
        %1116 = vmatmul.mubr.f32.gmra.mxu0 %v1115
        %v1117 = vpop.f32.mrf.mxu0
        %v1118 = vadd.f32 %v929, %v1117
        %v1119 = vpop.f32.mrf.mxu0
        %1120 = vmatprep.mubr.f32.mxu0 0.0
        %v1121 = vand.u32 %v214, 4294901760
        %1122 = vmatmul.mubr.f32.gmra.mxu0 %v1121
        %v1123 = vpop.f32.mrf.mxu0
        %v1124 = vadd.f32 %v937, %v1123
        %v1125 = vpop.f32.mrf.mxu0
        %1126 = vmatprep.mubr.f32.mxu0 0.0
        %v1127 = vand.u32 %v217, 4294901760
        %1128 = vmatmul.mubr.f32.gmra.mxu0 %v1127
        %v1129 = vpop.f32.mrf.mxu0
        %v1130 = vadd.f32 %v945, %v1129
        %v1131 = vpop.f32.mrf.mxu0
        %1132 = vmatprep.mubr.f32.mxu0 0.0
        %v1133 = vand.u32 %v220, 4294901760
        %1134 = vmatmul.mubr.f32.gmra.mxu0 %v1133
        %v1135 = vpop.f32.mrf.mxu0
        %v1136 = vadd.f32 %v953, %v1135
        %v1137 = vpop.f32.mrf.mxu0
        %1138 = vmatprep.mubr.f32.mxu0 0.0
        %v1139 = vand.u32 %v223, 4294901760
        %1140 = vmatmul.mubr.f32.gmra.mxu0 %v1139
        %v1141 = vpop.f32.mrf.mxu0
        %v1142 = vadd.f32 %v961, %v1141
        %v1143 = vpop.f32.mrf.mxu0
        %1144 = vmatprep.mubr.f32.mxu0 0.0
        %v1145 = vand.u32 %v226, 4294901760
        %1146 = vmatmul.mubr.f32.gmra.mxu0 %v1145
        %v1147 = vpop.f32.mrf.mxu0
        %v1148 = vadd.f32 %v969, %v1147
        %v1149 = vpop.f32.mrf.mxu0
        %1150 = vmatprep.mubr.f32.mxu0 0.0
        %v1151 = vand.u32 %v229, 4294901760
        %1152 = vmatmul.mubr.f32.gmra.mxu0 %v1151
        %v1153 = vpop.f32.mrf.mxu0
        %v1154 = vadd.f32 %v977, %v1153
        %v1155 = vpop.f32.mrf.mxu0
        %1156 = vmatprep.mubr.f32.mxu0 0.0
        %v1157 = vand.u32 %v232, 4294901760
        %1158 = vmatmul.mubr.f32.gmra.mxu0 %v1157
        %v1159 = vpop.f32.mrf.mxu0
        %v1160 = vadd.f32 %v985, %v1159
        %v1161 = vpop.f32.mrf.mxu0
        %1162 = vmatprep.mubr.f32.mxu0 0.0
        %v1163 = vand.u32 %v235, 4294901760
        %1164 = vmatmul.mubr.f32.gmra.mxu0 %v1163
        %v1165 = vpop.f32.mrf.mxu0
        %v1166 = vadd.f32 %v993, %v1165
        %v1167 = vpop.f32.mrf.mxu0
        %1168 = vmatprep.mubr.f32.mxu0 0.0
        %v1169 = vand.u32 %v238, 4294901760
        %1170 = vmatmul.mubr.f32.gmra.mxu0 %v1169
        %v1171 = vpop.f32.mrf.mxu0
        %v1172 = vadd.f32 %v1001, %v1171
        %v1173 = vpop.f32.mrf.mxu0
        %1174 = vmatprep.mubr.f32.mxu0 0.0
        %v1175 = vand.u32 %v241, 4294901760
        %1176 = vmatmul.mubr.f32.gmra.mxu0 %v1175
        %v1177 = vpop.f32.mrf.mxu0
        %v1178 = vadd.f32 %v1009, %v1177
        %v1179 = vpop.f32.mrf.mxu0
        %1180 = vmatprep.mubr.f32.mxu0 0.0
        %v1181 = vand.u32 %v244, 4294901760
        %1182 = vmatmul.mubr.f32.gmra.mxu0 %v1181
        %v1183 = vpop.f32.mrf.mxu0
        %v1184 = vadd.f32 %v1017, %v1183
        %v1185 = vpop.f32.mrf.mxu0
        %1186 = vdwg.mxu0
        %1187 = vmatprep.subr.mxu0 0.0
        %1188 = vmatpush1.msra.mxu0 0.0
        %1189 = vmatprep.subr.mxu0 0.0
        %1190 = vmatpush1.msra.mxu0 0.0
        %1191 = vmatprep.subr.mxu0 0.0
        %1192 = vmatpush1.msra.mxu0 0.0
        %1193 = vmatprep.subr.mxu0 0.0
        %1194 = vmatpush1.msra.mxu0 0.0
        %1195 = vmatprep.subr.mxu0 0.0
        %1196 = vmatpush1.msra.mxu0 0.0
        %1197 = vmatprep.subr.mxu0 0.0
        %1198 = vmatpush1.msra.mxu0 0.0
        %1199 = vmatprep.subr.mxu0 0.0
        %1200 = vmatpush1.msra.mxu0 0.0
        %1201 = vmatprep.subr.mxu0 0.0
        %1202 = vmatpush1.msra.mxu0 0.0
        %1203 = vmatprep.subr.mxu0 0.0
        %1204 = vmatpush1.msra.mxu0 0.0
        %1205 = vmatprep.subr.mxu0 0.0
        %1206 = vmatpush1.msra.mxu0 0.0
        %1207 = vmatprep.subr.mxu0 0.0
        %1208 = vmatpush1.msra.mxu0 0.0
        %1209 = vmatprep.subr.mxu0 0.0
        %1210 = vmatpush1.msra.mxu0 0.0
        %1211 = vmatprep.subr.mxu0 0.0
        %1212 = vmatpush1.msra.mxu0 0.0
        %1213 = vmatprep.subr.mxu0 0.0
        %1214 = vmatpush1.msra.mxu0 0.0
        %1215 = vmatprep.subr.mxu0 0.0
        %v1216 = vand.u32 %v189, 4294901760
        %1217 = vmatpush1.msra.mxu0 %v1216
        %1218 = vmatprep.subr.mxu0 0.0
        %v1219 = vand.u32 %v188, 4294901760
        %1220 = vmatpush1.msra.mxu0 %v1219
        %1221 = vmatprep.subr.mxu0 0.0
        %1222 = vmatpush2.msra.mxu0 0.0
        %1223 = vmatprep.subr.mxu0 0.0
        %1224 = vmatpush2.msra.mxu0 0.0
        %1225 = vmatprep.subr.mxu0 0.0
        %1226 = vmatpush2.msra.mxu0 0.0
        %1227 = vmatprep.subr.mxu0 0.0
        %1228 = vmatpush2.msra.mxu0 0.0
        %1229 = vmatprep.subr.mxu0 0.0
        %1230 = vmatpush2.msra.mxu0 0.0
        %1231 = vmatprep.subr.mxu0 0.0
        %1232 = vmatpush2.msra.mxu0 0.0
        %1233 = vmatprep.subr.mxu0 0.0
        %1234 = vmatpush2.msra.mxu0 0.0
        %1235 = vmatprep.subr.mxu0 0.0
        %1236 = vmatpush2.msra.mxu0 0.0
        %1237 = vmatprep.subr.mxu0 0.0
        %1238 = vmatpush2.msra.mxu0 0.0
        %1239 = vmatprep.subr.mxu0 0.0
        %1240 = vmatpush2.msra.mxu0 0.0
        %1241 = vmatprep.subr.mxu0 0.0
        %1242 = vmatpush2.msra.mxu0 0.0
        %1243 = vmatprep.subr.mxu0 0.0
        %1244 = vmatpush2.msra.mxu0 0.0
        %1245 = vmatprep.subr.mxu0 0.0
        %1246 = vmatpush2.msra.mxu0 0.0
        %1247 = vmatprep.subr.mxu0 0.0
        %1248 = vmatpush2.msra.mxu0 0.0
        %1249 = vmatprep.subr.mxu0 0.0
        %1250 = vmatpush2.msra.mxu0 0.0
        %1251 = vmatprep.subr.mxu0 0.0
        %1252 = vmatpush2.msra.mxu0 0.0
        %1253 = vmatprep.mubr.f32.mxu0 0.0
        %v1254 = vand.u32 %v199, 4294901760
        %1255 = vmatmul.mubr.f32.gmra.mxu0 %v1254
        %v1256 = vpop.f32.mrf.mxu0
        %v1257 = vadd.f32 %v1094, %v1256
        %v1258 = vpop.f32.mrf.mxu0
        %1259 = vmatprep.mubr.f32.mxu0 0.0
        %v1260 = vand.u32 %v202, 4294901760
        %1261 = vmatmul.mubr.f32.gmra.mxu0 %v1260
        %v1262 = vpop.f32.mrf.mxu0
        %v1263 = vadd.f32 %v1100, %v1262
        %v1264 = vpop.f32.mrf.mxu0
        %1265 = vmatprep.mubr.f32.mxu0 0.0
        %v1266 = vand.u32 %v205, 4294901760
        %1267 = vmatmul.mubr.f32.gmra.mxu0 %v1266
        %v1268 = vpop.f32.mrf.mxu0
        %v1269 = vadd.f32 %v1106, %v1268
        %v1270 = vpop.f32.mrf.mxu0
        %1271 = vmatprep.mubr.f32.mxu0 0.0
        %v1272 = vand.u32 %v208, 4294901760
        %1273 = vmatmul.mubr.f32.gmra.mxu0 %v1272
        %v1274 = vpop.f32.mrf.mxu0
        %v1275 = vadd.f32 %v1112, %v1274
        %v1276 = vpop.f32.mrf.mxu0
        %1277 = vmatprep.mubr.f32.mxu0 0.0
        %v1278 = vand.u32 %v211, 4294901760
        %1279 = vmatmul.mubr.f32.gmra.mxu0 %v1278
        %v1280 = vpop.f32.mrf.mxu0
        %v1281 = vadd.f32 %v1118, %v1280
        %v1282 = vpop.f32.mrf.mxu0
        %1283 = vmatprep.mubr.f32.mxu0 0.0
        %v1284 = vand.u32 %v214, 4294901760
        %1285 = vmatmul.mubr.f32.gmra.mxu0 %v1284
        %v1286 = vpop.f32.mrf.mxu0
        %v1287 = vadd.f32 %v1124, %v1286
        %v1288 = vpop.f32.mrf.mxu0
        %1289 = vmatprep.mubr.f32.mxu0 0.0
        %v1290 = vand.u32 %v217, 4294901760
        %1291 = vmatmul.mubr.f32.gmra.mxu0 %v1290
        %v1292 = vpop.f32.mrf.mxu0
        %v1293 = vadd.f32 %v1130, %v1292
        %v1294 = vpop.f32.mrf.mxu0
        %1295 = vmatprep.mubr.f32.mxu0 0.0
        %v1296 = vand.u32 %v220, 4294901760
        %1297 = vmatmul.mubr.f32.gmra.mxu0 %v1296
        %v1298 = vpop.f32.mrf.mxu0
        %v1299 = vadd.f32 %v1136, %v1298
        %v1300 = vpop.f32.mrf.mxu0
        %1301 = vmatprep.mubr.f32.mxu0 0.0
        %v1302 = vand.u32 %v223, 4294901760
        %1303 = vmatmul.mubr.f32.gmra.mxu0 %v1302
        %v1304 = vpop.f32.mrf.mxu0
        %v1305 = vadd.f32 %v1142, %v1304
        %v1306 = vpop.f32.mrf.mxu0
        %1307 = vmatprep.mubr.f32.mxu0 0.0
        %v1308 = vand.u32 %v226, 4294901760
        %1309 = vmatmul.mubr.f32.gmra.mxu0 %v1308
        %v1310 = vpop.f32.mrf.mxu0
        %v1311 = vadd.f32 %v1148, %v1310
        %v1312 = vpop.f32.mrf.mxu0
        %1313 = vmatprep.mubr.f32.mxu0 0.0
        %v1314 = vand.u32 %v229, 4294901760
        %1315 = vmatmul.mubr.f32.gmra.mxu0 %v1314
        %v1316 = vpop.f32.mrf.mxu0
        %v1317 = vadd.f32 %v1154, %v1316
        %v1318 = vpop.f32.mrf.mxu0
        %1319 = vmatprep.mubr.f32.mxu0 0.0
        %v1320 = vand.u32 %v232, 4294901760
        %1321 = vmatmul.mubr.f32.gmra.mxu0 %v1320
        %v1322 = vpop.f32.mrf.mxu0
        %v1323 = vadd.f32 %v1160, %v1322
        %v1324 = vpop.f32.mrf.mxu0
        %1325 = vmatprep.mubr.f32.mxu0 0.0
        %v1326 = vand.u32 %v235, 4294901760
        %1327 = vmatmul.mubr.f32.gmra.mxu0 %v1326
        %v1328 = vpop.f32.mrf.mxu0
        %v1329 = vadd.f32 %v1166, %v1328
        %v1330 = vpop.f32.mrf.mxu0
        %1331 = vmatprep.mubr.f32.mxu0 0.0
        %v1332 = vand.u32 %v238, 4294901760
        %1333 = vmatmul.mubr.f32.gmra.mxu0 %v1332
        %v1334 = vpop.f32.mrf.mxu0
        %v1335 = vadd.f32 %v1172, %v1334
        %v1336 = vpop.f32.mrf.mxu0
        %1337 = vmatprep.mubr.f32.mxu0 0.0
        %v1338 = vand.u32 %v241, 4294901760
        %1339 = vmatmul.mubr.f32.gmra.mxu0 %v1338
        %v1340 = vpop.f32.mrf.mxu0
        %v1341 = vadd.f32 %v1178, %v1340
        %v1342 = vpop.f32.mrf.mxu0
        %1343 = vmatprep.mubr.f32.mxu0 0.0
        %v1344 = vand.u32 %v244, 4294901760
        %1345 = vmatmul.mubr.f32.gmra.mxu0 %v1344
        %v1346 = vpop.f32.mrf.mxu0
        %v1347 = vadd.f32 %v1184, %v1346
        %v1348 = vpop.f32.mrf.mxu0
        %1349 = vdwg.mxu0
        %v1350 = vmax.f32 %v1257, 0.0
        %v1351 = vmax.f32 %v1263, 0.0
        %v1352 = vmax.f32 %v1269, 0.0
        %v1353 = vmax.f32 %v1275, 0.0
        %v1354 = vmax.f32 %v1281, 0.0
        %v1355 = vmax.f32 %v1287, 0.0
        %v1356 = vmax.f32 %v1293, 0.0
        %v1357 = vmax.f32 %v1299, 0.0
        %v1358 = vmax.f32 %v1305, 0.0
        %v1359 = vmax.f32 %v1311, 0.0
        %v1360 = vmax.f32 %v1317, 0.0
        %v1361 = vmax.f32 %v1323, 0.0
        %v1362 = vmax.f32 %v1329, 0.0
        %v1363 = vmax.f32 %v1335, 0.0
        %v1364 = vmax.f32 %v1341, 0.0
        %v1365 = vmax.f32 %v1347, 0.0
        %1366 = vst [vmem:[%s164] sm:$0xff] %v1350
        %1367 = vst [vmem:[%s164 + $0x8] sm:$0xff] %v1351
        %1368 = vst [vmem:[%s164 + $0x10] sm:$0xff] %v1352
        %1369 = vst [vmem:[%s164 + $0x18] sm:$0xff] %v1353
        %1370 = vst [vmem:[%s164 + $0x20] sm:$0xff] %v1354
        %1371 = vst [vmem:[%s164 + $0x28] sm:$0xff] %v1355
        %1372 = vst [vmem:[%s164 + $0x30] sm:$0xff] %v1356
        %1373 = vst [vmem:[%s164 + $0x38] sm:$0xff] %v1357
        %1374 = vst [vmem:[%s164 + $0x40] sm:$0xff] %v1358
        %1375 = vst [vmem:[%s164 + $0x48] sm:$0xff] %v1359
        %1376 = vst [vmem:[%s164 + $0x50] sm:$0xff] %v1360
        %1377 = vst [vmem:[%s164 + $0x58] sm:$0xff] %v1361
        %1378 = vst [vmem:[%s164 + $0x60] sm:$0xff] %v1362
        %1379 = vst [vmem:[%s164 + $0x68] sm:$0xff] %v1363
        %1380 = vst [vmem:[%s164 + $0x70] sm:$0xff] %v1364
        %1381 = vst [vmem:[%s164 + $0x78] sm:$0xff] %v1365
        %s1382 = sand.u32 %s93, 1
        %s1383 = scalar_lea.sflag [#allocation3], %s1382
        %s1384 = sand.u32 %s93, 1
        %s1385 = smul.addr %s1384, 128
        %s1386 = scalar_lea.vmem [#allocation2], %s1385
        // Predicated region
        $region33: #{tpu_custom_call.1} parent=31 // pred_check
          %p1387 = pneg %p103
        $region34: #{tpu_custom_call.1} parent=31 // pred_check_branch
          %1389 = sbr.rel (%p1387) target = $region36
        $region35: #{tpu_custom_call.1} parent=31 // pred_region
          %s1390 = smul.u32 16, %s17
          %s1392 = ssub.s32 2048, 2048
          %1393 = vsyncadd %s1383, %s1392
          %s1394 = smul.addr %s1390, 128
          %s1395 = scalar_lea.hbm %s3, %s1394
          %s1396 = sshll.u32 %s1386, 4
          %s1397 = int_to_ptr.vmem [resolvable:$true] %s1396
          %1402 = dma.vmem_to_hbm [thread:$0]  %s1397, 2048, %s1395, %s1383, 128, 128, 8
        $region36: #{tpu_custom_call.1} parent=31 // pred_fallthru
          _
      $region32: #{tpu_custom_call.1} parent=5 // pred_fallthru
        _
      %p1403 = scmp.le.s32.totalorder 2, %s12
      // Predicated region
      $region37: #{tpu_custom_call.1} parent=5 // pred_check
        %p1404 = pneg %p1403
      $region38: #{tpu_custom_call.1} parent=5 // pred_check_branch
        %1406 = sbr.rel (%p1404) target = $region40
      $region39: #{tpu_custom_call.1} parent=5 // pred_region
        %s1407 = ssub.s32 %s12, 2
        // Predicated region
        $region41: #{tpu_custom_call.1} parent=39 // pred_check
          %p1408 = pneg %p109
        $region42: #{tpu_custom_call.1} parent=39 // pred_check_branch
          %1410 = sbr.rel (%p1408) target = $region44
        $region43: #{tpu_custom_call.1} parent=39 // pred_region
          %s1411 = sand.u32 %s94, 1
          %s1412 = scalar_lea.sflag [#allocation3], %s1411
          %s1413 = sand.u32 %s94, 1
          %s1414 = smul.addr %s1413, 128
          %s1415 = scalar_lea.vmem [#allocation2], %s1414
          %1416 = dma.done %s1412, 2048
        $region44: #{tpu_custom_call.1} parent=39 // pred_fallthru
          _
      $region40: #{tpu_custom_call.1} parent=5 // pred_fallthru
        _
    $region6: #{tpu_custom_call.1} parent=1 // loop_footer
      %s16 = sadd.s32 1, %s12
    $region7: #{tpu_custom_call.1} parent=1 // loop_footer_branch
      %11 = sbr.rel target = $region3
    $region8: #{tpu_custom_call.1} parent=1 // loop_exit
      _
    %1417 = vsyncpa [#allocation3], 1
    %s1418 = scalar_lea.sflag [#allocation3], 1
    %1419 = vsyncpa %s1418, 1

</llo_original>
